<compile_context>
chip_gen: v7x
topology: tpu7x:2x2x1
jax: 0.10.0
libtpu: 0.0.40
codegen_flags: <defaults>
</compile_context>

<pallas_src>
import math

import numpy as np
import jax
import jax.numpy as jnp
from jax import lax
from jax.experimental import pallas as pl
from jax.experimental.pallas import tpu as pltpu

IN_DIM = 16
MEM_DIM = 32
STATE_W = 128  # lane-dense state row: [c (M) | h (M) | 64 unused lanes]


# ------------------------------- Pallas kernel --------------------------------
def make_tree_lstm(num_nodes, max_children, seq_len):
    """Single-invocation kernel evaluating every node of a tree in post-order."""
    M = MEM_DIM
    NC = max_children  # real max fan-out (missing children -> zero-sentinel row)

    def kernel(tok_ref, cix_ref,      # SMEM: token index / flat child-index table
               gx_ref, wh_ref,        # VMEM: precomputed x-side gates, fused Wh slab
               out_ref):              # VMEM: (num_nodes+1, 128) resident state slab
        # Zero the whole slab once; row `num_nodes` is the permanent zero
        # sentinel for padded / missing children (so stale-VMEM reads are
        # impossible and f * child_c contributes exactly 0).
        out_ref[...] = jnp.zeros(out_ref.shape, out_ref.dtype)

        # Hoisted loop-invariant pad for the lane-dense row store.
        pad = jnp.zeros((1, STATE_W - 2 * M), jnp.float32)

        def node_step(n, carry):
            # Gather this node's children rows straight into vregs (no scratch
            # round-trip).  Post-order guarantees read-after-write on out_ref.
            rows = [out_ref[pl.ds(cix_ref[n * NC + j], 1), :] for j in range(NC)]
            ch = jnp.concatenate(rows, axis=0)            # (NC, 128)
            child_c = ch[:, :M]                           # (NC, M)
            child_h = ch[:, M:2 * M]                      # (NC, M)

            # Token-side projection was precomputed outside the kernel:
            # gx = x @ [Wxi|Wxo|Wxu|Wxf] + (b_ioux+b_iouh | b_fx+b_fh).
            gx = gx_ref[pl.ds(tok_ref[n], 1), :]          # (1, 4M)

            # Single MXU push per node: all child h rows through the fused slab
            # hc = child_h @ [Whi|Who|Whu|Whf].
            hc = jnp.dot(child_h, wh_ref[...],
                         preferred_element_type=jnp.float32)   # (NC, 4M)

            # iou uses child_h_sum; by linearity sum_j(h_j @ Wh) == h_sum @ Wh.
            iou = gx[:, :3 * M] + jnp.sum(hc[:, :3 * M], axis=0, keepdims=True)
            i = jax.nn.sigmoid(iou[:, :M])
            o = jax.nn.sigmoid(iou[:, M:2 * M])
            u = jnp.tanh(iou[:, 2 * M:3 * M])

            # Forget gate per child row; x-side term (incl. both biases) broadcasts.
            f = jax.nn.sigmoid(hc[:, 3 * M:] + gx[:, 3 * M:])     # (NC, M)

            c = i * u + jnp.sum(f * child_c, axis=0, keepdims=True)   # (1, M)
            h = o * jnp.tanh(c)

            out_ref[pl.ds(n, 1), :] = jnp.concatenate([c, h, pad], axis=1)
            return carry

        # Sequential child->parent dependency: one in-kernel loop, no grid.
        lax.fori_loop(0, num_nodes, node_step, 0, unroll=(num_nodes <= 16))

    call = pl.pallas_call(
        kernel,
        out_shape=jax.ShapeDtypeStruct((num_nodes + 1, STATE_W), jnp.float32),
        in_specs=[
            pl.BlockSpec(memory_space=pltpu.MemorySpace.SMEM),   # tok  (num_nodes,)
            pl.BlockSpec(memory_space=pltpu.MemorySpace.SMEM),   # cix  (num_nodes*NC,)
            pl.BlockSpec(memory_space=pltpu.MemorySpace.VMEM),   # gx   (seq+1, 4M)
            pl.BlockSpec(memory_space=pltpu.MemorySpace.VMEM),   # Wh   (M, 4M)
        ],
        out_specs=pl.BlockSpec(memory_space=pltpu.MemorySpace.VMEM),
        # Resident footprint is tiny (few KiB); explicit limit documents the
        # budget and stays well under v7x's 64 MiB physical / 32 MiB default.
        compiler_params=pltpu.CompilerParams(vmem_limit_bytes=32 * 1024 * 1024),
    )

    @jax.jit
    def run(tok, cix, inputs_ext, wx, wh, b):
        # Token-side projection hoisted off the sequential critical path:
        # one batched matmul over all tokens (plain XLA pre-pass).
        gx = jnp.dot(inputs_ext, wx, preferred_element_type=jnp.float32) + b
        return call(tok, cix, gx, wh)

    return run


# --------------------------- parameter initialization -------------------------
def init_params(key):
    """Deterministic PyTorch-Linear-style init (uniform(-1/sqrt(fan_in), ..))."""
    def linear(k, fan_in, fan_out):
        bound = 1.0 / math.sqrt(fan_in)
        kw, kb = jax.random.split(k)
        w = jax.random.uniform(kw, (fan_out, fan_in), jnp.float32, -bound, bound)
        b = jax.random.uniform(kb, (fan_out,), jnp.float32, -bound, bound)
        return w, b

    k1, k2, k3, k4 = jax.random.split(key, 4)
    ioux_w, ioux_b = linear(k1, IN_DIM, 3 * MEM_DIM)
    iouh_w, iouh_b = linear(k2, MEM_DIM, 3 * MEM_DIM)
    fx_w, fx_b = linear(k3, IN_DIM, MEM_DIM)
    fh_w, fh_b = linear(k4, MEM_DIM, MEM_DIM)
    return dict(ioux_w=ioux_w, ioux_b=ioux_b, iouh_w=iouh_w, iouh_b=iouh_b,
                fx_w=fx_w, fx_b=fx_b, fh_w=fh_w, fh_b=fh_b)


def pack_fused_params(p):
    """Fuse the 4 projections into two (fan_in, 4M=128) slabs + one (1,128) bias."""
    M = MEM_DIM
    wx = jnp.concatenate([p["ioux_w"].T, p["fx_w"].T], axis=1)   # (IN_DIM, 4M)
    wh = jnp.concatenate([p["iouh_w"].T, p["fh_w"].T], axis=1)   # (M, 4M)
    b = jnp.concatenate([p["ioux_b"] + p["iouh_b"],
                         p["fx_b"] + p["fh_b"]]).reshape(1, 4 * M)
    return wx, wh, b


# ------------------------------- tree / topology -------------------------------
class Tree:
    def __init__(self, idx, children=()):
        self.idx = idx
        self.children = list(children)
        self.num_children = len(self.children)
        self.state = None
        self.ref_state = None


def postorder(tree):
    order = []

    def rec(t):
        for c in t.children:
            rec(c)
        order.append(t)

    rec(tree)
    return order


def build_topology(tree, seq_len):
    """Flatten the tree into SMEM tables: token idx + flat child-position table."""
    nodes = postorder(tree)
    n = len(nodes)
    pos = {id(t): k for k, t in enumerate(nodes)}

    # real max fan-out only — no padding to a sublane multiple
    mc = max(max((t.num_children for t in nodes), default=0), 1)

    tok = np.full((n,), seq_len, dtype=np.int32)   # seq_len row = zero embedding
    cix = np.full((n * mc,), n, dtype=np.int32)    # n = zero-sentinel state row
    for k, t in enumerate(nodes):
        if t.idx < seq_len:
            tok[k] = t.idx
        for j, c in enumerate(t.children):
            cix[k * mc + j] = pos[id(c)]
    return nodes, tok, cix, mc


# ----------------------------- pure-JAX reference ------------------------------
def node_forward_ref(p, x, child_c, child_h):
    M = MEM_DIM
    ch_sum = jnp.sum(child_h, axis=0, keepdims=True)
    iou = (x @ p["ioux_w"].T + p["ioux_b"]) + (ch_sum @ p["iouh_w"].T + p["iouh_b"])
    i, o, u = iou[:, :M], iou[:, M:2 * M], iou[:, 2 * M:]
    i, o, u = jax.nn.sigmoid(i), jax.nn.sigmoid(o), jnp.tanh(u)
    f = jax.nn.sigmoid((child_h @ p["fh_w"].T + p["fh_b"])
                       + (x @ p["fx_w"].T + p["fx_b"]))
    c = i * u + jnp.sum(f * child_c, axis=0, keepdims=True)
    h = o * jnp.tanh(c)
    return c, h


def tree_forward_ref(tree, inputs, params):
    for child in tree.children:
        tree_forward_ref(child, inputs, params)
    if tree.num_children == 0:
        child_c = jnp.zeros((1, MEM_DIM), jnp.float32)
        child_h = jnp.zeros((1, MEM_DIM), jnp.float32)
    else:
        child_c = jnp.concatenate([c.ref_state[0] for c in tree.children], axis=0)
        child_h = jnp.concatenate([c.ref_state[1] for c in tree.children], axis=0)
    x = jnp.zeros_like(inputs[0]) if tree.idx >= inputs.shape[0] else inputs[tree.idx]
    tree.ref_state = node_forward_ref(params, x[None, :], child_c, child_h)
    return tree.ref_state


# -------------------------------------- main -----------------------------------
if __name__ == "__main__":
    key = jax.random.PRNGKey(0)
    kp, kx = jax.random.split(key)

    params = init_params(kp)
    wx, wh, b = pack_fused_params(params)

    SEQ = 8
    inputs = jax.random.normal(kx, (SEQ, IN_DIM), jnp.float32)          # (seq, in_dim)
    # append a zero row used by out-of-range token indices
    inputs_ext = jnp.concatenate(
        [inputs, jnp.zeros((1, IN_DIM), jnp.float32)], axis=0)          # (seq+1, in_dim)

    # small dependency tree over the 8 tokens (same topology as before)
    tree = Tree(0, [
        Tree(1, [Tree(2), Tree(3)]),
        Tree(4, [Tree(5)]),
        Tree(6, [Tree(7), Tree(9)]),   # idx 9 >= len(inputs) -> zero embedding path
    ])

    nodes, tok, cix, mc = build_topology(tree, SEQ)
    num_nodes = len(nodes)

    run = make_tree_lstm(num_nodes, mc, SEQ)
    out = run(jnp.asarray(tok), jnp.asarray(cix), inputs_ext, wx, wh, b)
    out = jax.block_until_ready(out)

    states = np.asarray(out[:num_nodes, :2 * MEM_DIM])   # (num_nodes, 2*MEM_DIM)

    # sanity-check every node against a pure-JAX reference of the same recursion
    tree_forward_ref(tree, inputs, params)
    for k, t in enumerate(nodes):
        c_ref, h_ref = t.ref_state
        assert np.allclose(states[k, :MEM_DIM], np.asarray(c_ref)[0],
                           atol=1e-5, rtol=1e-5), f"c mismatch at node {k}"
        assert np.allclose(states[k, MEM_DIM:], np.asarray(h_ref)[0],
                           atol=1e-5, rtol=1e-5), f"h mismatch at node {k}"

    print("KERNEL_OK")
</pallas_src>

<mosaic_0001>
module attributes {stable_mosaic.version = 11 : i64} {
  func.func @kernel(%arg0: memref<9xi32, #tpu.memory_space<smem>>, %arg1: memref<27xi32, #tpu.memory_space<smem>>, %arg2: memref<9x128xf32, #tpu.memory_space<vmem>>, %arg3: memref<32x128xf32, #tpu.memory_space<vmem>>, %arg4: memref<10x128xf32, #tpu.memory_space<vmem>>) attributes {dimension_semantics = [], scalar_prefetch = 0 : i64, scratch_operands = 0 : i64, tpu.core_type = #tpu.core_type<tc>} {
    %cst = arith.constant 0.000000e+00 : f32
    %0 = vector.broadcast %cst : f32 to vector<10x128xf32>
    %c0 = arith.constant 0 : index
    %c0_0 = arith.constant 0 : index
    %1 = vector.load %arg4[%c0, %c0_0] : memref<10x128xf32, #tpu.memory_space<vmem>>, vector<10x128xf32>
    tpu.vector_store %arg4[%c0, %c0_0], %0 {strides = array<i32>} : memref<10x128xf32, #tpu.memory_space<vmem>>, vector<10x128xf32>,
    %cst_1 = arith.constant 0.000000e+00 : f32
    %2 = vector.broadcast %cst_1 : f32 to vector<1x64xf32>
    %c0_i32 = arith.constant 0 : i32
    %c3_i32 = arith.constant 3 : i32
    %3 = arith.muli %c0_i32, %c3_i32 : i32
    %c0_i32_2 = arith.constant 0 : i32
    %4 = arith.addi %3, %c0_i32_2 : i32
    %5 = arith.index_cast %4 : i32 to index
    %6 = memref.load %arg1[%5] : memref<27xi32, #tpu.memory_space<smem>>
    %7 = arith.index_cast %6 : i32 to index
    %c0_3 = arith.constant 0 : index
    %8 = vector.load %arg4[%7, %c0_3] : memref<10x128xf32, #tpu.memory_space<vmem>>, vector<1x128xf32>
    %c3_i32_4 = arith.constant 3 : i32
    %9 = arith.muli %c0_i32, %c3_i32_4 : i32
    %c1_i32 = arith.constant 1 : i32
    %10 = arith.addi %9, %c1_i32 : i32
    %11 = arith.index_cast %10 : i32 to index
    %12 = memref.load %arg1[%11] : memref<27xi32, #tpu.memory_space<smem>>
    %13 = arith.index_cast %12 : i32 to index
    %c0_5 = arith.constant 0 : index
    %14 = vector.load %arg4[%13, %c0_5] : memref<10x128xf32, #tpu.memory_space<vmem>>, vector<1x128xf32>
    %c3_i32_6 = arith.constant 3 : i32
    %15 = arith.muli %c0_i32, %c3_i32_6 : i32
    %c2_i32 = arith.constant 2 : i32
    %16 = arith.addi %15, %c2_i32 : i32
    %17 = arith.index_cast %16 : i32 to index
    %18 = memref.load %arg1[%17] : memref<27xi32, #tpu.memory_space<smem>>
    %19 = arith.index_cast %18 : i32 to index
    %c0_7 = arith.constant 0 : index
    %20 = vector.load %arg4[%19, %c0_7] : memref<10x128xf32, #tpu.memory_space<vmem>>, vector<1x128xf32>
    %21 = tpu.concatenate %8, %14, %20 in 0 : vector<1x128xf32>, vector<1x128xf32>, vector<1x128xf32> -> vector<3x128xf32>
    %22 = vector.extract_strided_slice %21 {offsets = [0, 0], sizes = [3, 32], strides = [1, 1]} : vector<3x128xf32> to vector<3x32xf32>
    %23 = vector.extract_strided_slice %21 {offsets = [0, 32], sizes = [3, 32], strides = [1, 1]} : vector<3x128xf32> to vector<3x32xf32>
    %24 = arith.index_cast %c0_i32 : i32 to index
    %25 = memref.load %arg0[%24] : memref<9xi32, #tpu.memory_space<smem>>
    %26 = arith.index_cast %25 : i32 to index
    %c0_8 = arith.constant 0 : index
    %27 = vector.load %arg2[%26, %c0_8] : memref<9x128xf32, #tpu.memory_space<vmem>>, vector<1x128xf32>
    %c0_9 = arith.constant 0 : index
    %c0_10 = arith.constant 0 : index
    %28 = vector.load %arg3[%c0_9, %c0_10] : memref<32x128xf32, #tpu.memory_space<vmem>>, vector<32x128xf32>
    %cst_11 = arith.constant dense<0.000000e+00> : vector<3x128xf32>
    %29 = tpu.matmul %23, %28, %cst_11 {dimension_numbers = #tpu.dot_dimension_numbers<[1], [0], [0], [1], [0, 0, 1, 1], [], []>} : vector<3x32xf32>, vector<32x128xf32>, vector<3x128xf32> -> vector<3x128xf32>
    %30 = vector.extract_strided_slice %27 {offsets = [0, 0], sizes = [1, 96], strides = [1, 1]} : vector<1x128xf32> to vector<1x96xf32>
    %31 = vector.extract_strided_slice %29 {offsets = [0, 0], sizes = [3, 96], strides = [1, 1]} : vector<3x128xf32> to vector<3x96xf32>
    %cst_12 = arith.constant dense<0.000000e+00> : vector<96xf32>
    %32 = vector.multi_reduction <add>, %31, %cst_12 [0] : vector<3x96xf32> to vector<96xf32>
    %33 = vector.shape_cast %32 : vector<96xf32> to vector<1x96xf32>
    %34 = arith.addf %30, %33 : vector<1x96xf32>
    %35 = vector.extract_strided_slice %34 {offsets = [0, 0], sizes = [1, 32], strides = [1, 1]} : vector<1x96xf32> to vector<1x32xf32>
    %36 = arith.negf %35 : vector<1x32xf32>
    %37 = math.exp %36 : vector<1x32xf32>
    %cst_13 = arith.constant 1.000000e+00 : f32
    %38 = vector.broadcast %cst_13 : f32 to vector<1x32xf32>
    %39 = arith.addf %38, %37 : vector<1x32xf32>
    %40 = arith.divf %38, %39 : vector<1x32xf32>
    %41 = vector.extract_strided_slice %34 {offsets = [0, 32], sizes = [1, 32], strides = [1, 1]} : vector<1x96xf32> to vector<1x32xf32>
    %42 = arith.negf %41 : vector<1x32xf32>
    %43 = math.exp %42 : vector<1x32xf32>
    %cst_14 = arith.constant 1.000000e+00 : f32
    %44 = vector.broadcast %cst_14 : f32 to vector<1x32xf32>
    %45 = arith.addf %44, %43 : vector<1x32xf32>
    %46 = arith.divf %44, %45 : vector<1x32xf32>
    %47 = vector.extract_strided_slice %34 {offsets = [0, 64], sizes = [1, 32], strides = [1, 1]} : vector<1x96xf32> to vector<1x32xf32>
    %48 = math.tanh %47 : vector<1x32xf32>
    %49 = vector.extract_strided_slice %29 {offsets = [0, 96], sizes = [3, 32], strides = [1, 1]} : vector<3x128xf32> to vector<3x32xf32>
    %50 = vector.extract_strided_slice %27 {offsets = [0, 96], sizes = [1, 32], strides = [1, 1]} : vector<1x128xf32> to vector<1x32xf32>
    %51 = vector.broadcast %50 : vector<1x32xf32> to vector<3x32xf32>
    %52 = arith.addf %49, %51 : vector<3x32xf32>
    %53 = arith.negf %52 : vector<3x32xf32>
    %54 = math.exp %53 : vector<3x32xf32>
    %cst_15 = arith.constant 1.000000e+00 : f32
    %55 = vector.broadcast %cst_15 : f32 to vector<3x32xf32>
    %56 = arith.addf %55, %54 : vector<3x32xf32>
    %57 = arith.divf %55, %56 : vector<3x32xf32>
    %58 = arith.mulf %40, %48 : vector<1x32xf32>
    %59 = arith.mulf %57, %22 : vector<3x32xf32>
    %cst_16 = arith.constant dense<0.000000e+00> : vector<32xf32>
    %60 = vector.multi_reduction <add>, %59, %cst_16 [0] : vector<3x32xf32> to vector<32xf32>
    %61 = vector.shape_cast %60 : vector<32xf32> to vector<1x32xf32>
    %62 = arith.addf %58, %61 : vector<1x32xf32>
    %63 = math.tanh %62 : vector<1x32xf32>
    %64 = arith.mulf %46, %63 : vector<1x32xf32>
    %65 = tpu.concatenate %62, %64, %2 in 1 : vector<1x32xf32>, vector<1x32xf32>, vector<1x64xf32> -> vector<1x128xf32>
    %66 = arith.index_cast %c0_i32 : i32 to index
    %c0_17 = arith.constant 0 : index
    %67 = vector.load %arg4[%66, %c0_17] : memref<10x128xf32, #tpu.memory_space<vmem>>, vector<1x128xf32>
    tpu.vector_store %arg4[%66, %c0_17], %65 {strides = array<i32>} : memref<10x128xf32, #tpu.memory_space<vmem>>, vector<1x128xf32>,
    %c1_i32_18 = arith.constant 1 : i32
    %c3_i32_19 = arith.constant 3 : i32
    %68 = arith.muli %c1_i32_18, %c3_i32_19 : i32
    %c0_i32_20 = arith.constant 0 : i32
    %69 = arith.addi %68, %c0_i32_20 : i32
    %70 = arith.index_cast %69 : i32 to index
    %71 = memref.load %arg1[%70] : memref<27xi32, #tpu.memory_space<smem>>
    %72 = arith.index_cast %71 : i32 to index
    %c0_21 = arith.constant 0 : index
    %73 = vector.load %arg4[%72, %c0_21] : memref<10x128xf32, #tpu.memory_space<vmem>>, vector<1x128xf32>
    %c3_i32_22 = arith.constant 3 : i32
    %74 = arith.muli %c1_i32_18, %c3_i32_22 : i32
    %c1_i32_23 = arith.constant 1 : i32
    %75 = arith.addi %74, %c1_i32_23 : i32
    %76 = arith.index_cast %75 : i32 to index
    %77 = memref.load %arg1[%76] : memref<27xi32, #tpu.memory_space<smem>>
    %78 = arith.index_cast %77 : i32 to index
    %c0_24 = arith.constant 0 : index
    %79 = vector.load %arg4[%78, %c0_24] : memref<10x128xf32, #tpu.memory_space<vmem>>, vector<1x128xf32>
    %c3_i32_25 = arith.constant 3 : i32
    %80 = arith.muli %c1_i32_18, %c3_i32_25 : i32
    %c2_i32_26 = arith.constant 2 : i32
    %81 = arith.addi %80, %c2_i32_26 : i32
    %82 = arith.index_cast %81 : i32 to index
    %83 = memref.load %arg1[%82] : memref<27xi32, #tpu.memory_space<smem>>
    %84 = arith.index_cast %83 : i32 to index
    %c0_27 = arith.constant 0 : index
    %85 = vector.load %arg4[%84, %c0_27] : memref<10x128xf32, #tpu.memory_space<vmem>>, vector<1x128xf32>
    %86 = tpu.concatenate %73, %79, %85 in 0 : vector<1x128xf32>, vector<1x128xf32>, vector<1x128xf32> -> vector<3x128xf32>
    %87 = vector.extract_strided_slice %86 {offsets = [0, 0], sizes = [3, 32], strides = [1, 1]} : vector<3x128xf32> to vector<3x32xf32>
    %88 = vector.extract_strided_slice %86 {offsets = [0, 32], sizes = [3, 32], strides = [1, 1]} : vector<3x128xf32> to vector<3x32xf32>
    %89 = arith.index_cast %c1_i32_18 : i32 to index
    %90 = memref.load %arg0[%89] : memref<9xi32, #tpu.memory_space<smem>>
    %91 = arith.index_cast %90 : i32 to index
    %c0_28 = arith.constant 0 : index
    %92 = vector.load %arg2[%91, %c0_28] : memref<9x128xf32, #tpu.memory_space<vmem>>, vector<1x128xf32>
    %c0_29 = arith.constant 0 : index
    %c0_30 = arith.constant 0 : index
    %93 = vector.load %arg3[%c0_29, %c0_30] : memref<32x128xf32, #tpu.memory_space<vmem>>, vector<32x128xf32>
    %cst_31 = arith.constant dense<0.000000e+00> : vector<3x128xf32>
    %94 = tpu.matmul %88, %93, %cst_31 {dimension_numbers = #tpu.dot_dimension_numbers<[1], [0], [0], [1], [0, 0, 1, 1], [], []>} : vector<3x32xf32>, vector<32x128xf32>, vector<3x128xf32> -> vector<3x128xf32>
    %95 = vector.extract_strided_slice %92 {offsets = [0, 0], sizes = [1, 96], strides = [1, 1]} : vector<1x128xf32> to vector<1x96xf32>
    %96 = vector.extract_strided_slice %94 {offsets = [0, 0], sizes = [3, 96], strides = [1, 1]} : vector<3x128xf32> to vector<3x96xf32>
    %cst_32 = arith.constant dense<0.000000e+00> : vector<96xf32>
    %97 = vector.multi_reduction <add>, %96, %cst_32 [0] : vector<3x96xf32> to vector<96xf32>
    %98 = vector.shape_cast %97 : vector<96xf32> to vector<1x96xf32>
    %99 = arith.addf %95, %98 : vector<1x96xf32>
    %100 = vector.extract_strided_slice %99 {offsets = [0, 0], sizes = [1, 32], strides = [1, 1]} : vector<1x96xf32> to vector<1x32xf32>
    %101 = arith.negf %100 : vector<1x32xf32>
    %102 = math.exp %101 : vector<1x32xf32>
    %cst_33 = arith.constant 1.000000e+00 : f32
    %103 = vector.broadcast %cst_33 : f32 to vector<1x32xf32>
    %104 = arith.addf %103, %102 : vector<1x32xf32>
    %105 = arith.divf %103, %104 : vector<1x32xf32>
    %106 = vector.extract_strided_slice %99 {offsets = [0, 32], sizes = [1, 32], strides = [1, 1]} : vector<1x96xf32> to vector<1x32xf32>
    %107 = arith.negf %106 : vector<1x32xf32>
    %108 = math.exp %107 : vector<1x32xf32>
    %cst_34 = arith.constant 1.000000e+00 : f32
    %109 = vector.broadcast %cst_34 : f32 to vector<1x32xf32>
    %110 = arith.addf %109, %108 : vector<1x32xf32>
    %111 = arith.divf %109, %110 : vector<1x32xf32>
    %112 = vector.extract_strided_slice %99 {offsets = [0, 64], sizes = [1, 32], strides = [1, 1]} : vector<1x96xf32> to vector<1x32xf32>
    %113 = math.tanh %112 : vector<1x32xf32>
    %114 = vector.extract_strided_slice %94 {offsets = [0, 96], sizes = [3, 32], strides = [1, 1]} : vector<3x128xf32> to vector<3x32xf32>
    %115 = vector.extract_strided_slice %92 {offsets = [0, 96], sizes = [1, 32], strides = [1, 1]} : vector<1x128xf32> to vector<1x32xf32>
    %116 = vector.broadcast %115 : vector<1x32xf32> to vector<3x32xf32>
    %117 = arith.addf %114, %116 : vector<3x32xf32>
    %118 = arith.negf %117 : vector<3x32xf32>
    %119 = math.exp %118 : vector<3x32xf32>
    %cst_35 = arith.constant 1.000000e+00 : f32
    %120 = vector.broadcast %cst_35 : f32 to vector<3x32xf32>
    %121 = arith.addf %120, %119 : vector<3x32xf32>
    %122 = arith.divf %120, %121 : vector<3x32xf32>
    %123 = arith.mulf %105, %113 : vector<1x32xf32>
    %124 = arith.mulf %122, %87 : vector<3x32xf32>
    %cst_36 = arith.constant dense<0.000000e+00> : vector<32xf32>
    %125 = vector.multi_reduction <add>, %124, %cst_36 [0] : vector<3x32xf32> to vector<32xf32>
    %126 = vector.shape_cast %125 : vector<32xf32> to vector<1x32xf32>
    %127 = arith.addf %123, %126 : vector<1x32xf32>
    %128 = math.tanh %127 : vector<1x32xf32>
    %129 = arith.mulf %111, %128 : vector<1x32xf32>
    %130 = tpu.concatenate %127, %129, %2 in 1 : vector<1x32xf32>, vector<1x32xf32>, vector<1x64xf32> -> vector<1x128xf32>
    %131 = arith.index_cast %c1_i32_18 : i32 to index
    %c0_37 = arith.constant 0 : index
    %132 = vector.load %arg4[%131, %c0_37] : memref<10x128xf32, #tpu.memory_space<vmem>>, vector<1x128xf32>
    tpu.vector_store %arg4[%131, %c0_37], %130 {strides = array<i32>} : memref<10x128xf32, #tpu.memory_space<vmem>>, vector<1x128xf32>,
    %c2_i32_38 = arith.constant 2 : i32
    %c3_i32_39 = arith.constant 3 : i32
    %133 = arith.muli %c2_i32_38, %c3_i32_39 : i32
    %c0_i32_40 = arith.constant 0 : i32
    %134 = arith.addi %133, %c0_i32_40 : i32
    %135 = arith.index_cast %134 : i32 to index
    %136 = memref.load %arg1[%135] : memref<27xi32, #tpu.memory_space<smem>>
    %137 = arith.index_cast %136 : i32 to index
    %c0_41 = arith.constant 0 : index
    %138 = vector.load %arg4[%137, %c0_41] : memref<10x128xf32, #tpu.memory_space<vmem>>, vector<1x128xf32>
    %c3_i32_42 = arith.constant 3 : i32
    %139 = arith.muli %c2_i32_38, %c3_i32_42 : i32
    %c1_i32_43 = arith.constant 1 : i32
    %140 = arith.addi %139, %c1_i32_43 : i32
    %141 = arith.index_cast %140 : i32 to index
    %142 = memref.load %arg1[%141] : memref<27xi32, #tpu.memory_space<smem>>
    %143 = arith.index_cast %142 : i32 to index
    %c0_44 = arith.constant 0 : index
    %144 = vector.load %arg4[%143, %c0_44] : memref<10x128xf32, #tpu.memory_space<vmem>>, vector<1x128xf32>
    %c3_i32_45 = arith.constant 3 : i32
    %145 = arith.muli %c2_i32_38, %c3_i32_45 : i32
    %c2_i32_46 = arith.constant 2 : i32
    %146 = arith.addi %145, %c2_i32_46 : i32
    %147 = arith.index_cast %146 : i32 to index
    %148 = memref.load %arg1[%147] : memref<27xi32, #tpu.memory_space<smem>>
    %149 = arith.index_cast %148 : i32 to index
    %c0_47 = arith.constant 0 : index
    %150 = vector.load %arg4[%149, %c0_47] : memref<10x128xf32, #tpu.memory_space<vmem>>, vector<1x128xf32>
    %151 = tpu.concatenate %138, %144, %150 in 0 : vector<1x128xf32>, vector<1x128xf32>, vector<1x128xf32> -> vector<3x128xf32>
    %152 = vector.extract_strided_slice %151 {offsets = [0, 0], sizes = [3, 32], strides = [1, 1]} : vector<3x128xf32> to vector<3x32xf32>
    %153 = vector.extract_strided_slice %151 {offsets = [0, 32], sizes = [3, 32], strides = [1, 1]} : vector<3x128xf32> to vector<3x32xf32>
    %154 = arith.index_cast %c2_i32_38 : i32 to index
    %155 = memref.load %arg0[%154] : memref<9xi32, #tpu.memory_space<smem>>
    %156 = arith.index_cast %155 : i32 to index
    %c0_48 = arith.constant 0 : index
    %157 = vector.load %arg2[%156, %c0_48] : memref<9x128xf32, #tpu.memory_space<vmem>>, vector<1x128xf32>
    %c0_49 = arith.constant 0 : index
    %c0_50 = arith.constant 0 : index
    %158 = vector.load %arg3[%c0_49, %c0_50] : memref<32x128xf32, #tpu.memory_space<vmem>>, vector<32x128xf32>
    %cst_51 = arith.constant dense<0.000000e+00> : vector<3x128xf32>
    %159 = tpu.matmul %153, %158, %cst_51 {dimension_numbers = #tpu.dot_dimension_numbers<[1], [0], [0], [1], [0, 0, 1, 1], [], []>} : vector<3x32xf32>, vector<32x128xf32>, vector<3x128xf32> -> vector<3x128xf32>
    %160 = vector.extract_strided_slice %157 {offsets = [0, 0], sizes = [1, 96], strides = [1, 1]} : vector<1x128xf32> to vector<1x96xf32>
    %161 = vector.extract_strided_slice %159 {offsets = [0, 0], sizes = [3, 96], strides = [1, 1]} : vector<3x128xf32> to vector<3x96xf32>
    %cst_52 = arith.constant dense<0.000000e+00> : vector<96xf32>
    %162 = vector.multi_reduction <add>, %161, %cst_52 [0] : vector<3x96xf32> to vector<96xf32>
    %163 = vector.shape_cast %162 : vector<96xf32> to vector<1x96xf32>
    %164 = arith.addf %160, %163 : vector<1x96xf32>
    %165 = vector.extract_strided_slice %164 {offsets = [0, 0], sizes = [1, 32], strides = [1, 1]} : vector<1x96xf32> to vector<1x32xf32>
    %166 = arith.negf %165 : vector<1x32xf32>
    %167 = math.exp %166 : vector<1x32xf32>
    %cst_53 = arith.constant 1.000000e+00 : f32
    %168 = vector.broadcast %cst_53 : f32 to vector<1x32xf32>
    %169 = arith.addf %168, %167 : vector<1x32xf32>
    %170 = arith.divf %168, %169 : vector<1x32xf32>
    %171 = vector.extract_strided_slice %164 {offsets = [0, 32], sizes = [1, 32], strides = [1, 1]} : vector<1x96xf32> to vector<1x32xf32>
    %172 = arith.negf %171 : vector<1x32xf32>
    %173 = math.exp %172 : vector<1x32xf32>
    %cst_54 = arith.constant 1.000000e+00 : f32
    %174 = vector.broadcast %cst_54 : f32 to vector<1x32xf32>
    %175 = arith.addf %174, %173 : vector<1x32xf32>
    %176 = arith.divf %174, %175 : vector<1x32xf32>
    %177 = vector.extract_strided_slice %164 {offsets = [0, 64], sizes = [1, 32], strides = [1, 1]} : vector<1x96xf32> to vector<1x32xf32>
    %178 = math.tanh %177 : vector<1x32xf32>
    %179 = vector.extract_strided_slice %159 {offsets = [0, 96], sizes = [3, 32], strides = [1, 1]} : vector<3x128xf32> to vector<3x32xf32>
    %180 = vector.extract_strided_slice %157 {offsets = [0, 96], sizes = [1, 32], strides = [1, 1]} : vector<1x128xf32> to vector<1x32xf32>
    %181 = vector.broadcast %180 : vector<1x32xf32> to vector<3x32xf32>
    %182 = arith.addf %179, %181 : vector<3x32xf32>
    %183 = arith.negf %182 : vector<3x32xf32>
    %184 = math.exp %183 : vector<3x32xf32>
    %cst_55 = arith.constant 1.000000e+00 : f32
    %185 = vector.broadcast %cst_55 : f32 to vector<3x32xf32>
    %186 = arith.addf %185, %184 : vector<3x32xf32>
    %187 = arith.divf %185, %186 : vector<3x32xf32>
    %188 = arith.mulf %170, %178 : vector<1x32xf32>
    %189 = arith.mulf %187, %152 : vector<3x32xf32>
    %cst_56 = arith.constant dense<0.000000e+00> : vector<32xf32>
    %190 = vector.multi_reduction <add>, %189, %cst_56 [0] : vector<3x32xf32> to vector<32xf32>
    %191 = vector.shape_cast %190 : vector<32xf32> to vector<1x32xf32>
    %192 = arith.addf %188, %191 : vector<1x32xf32>
    %193 = math.tanh %192 : vector<1x32xf32>
    %194 = arith.mulf %176, %193 : vector<1x32xf32>
    %195 = tpu.concatenate %192, %194, %2 in 1 : vector<1x32xf32>, vector<1x32xf32>, vector<1x64xf32> -> vector<1x128xf32>
    %196 = arith.index_cast %c2_i32_38 : i32 to index
    %c0_57 = arith.constant 0 : index
    %197 = vector.load %arg4[%196, %c0_57] : memref<10x128xf32, #tpu.memory_space<vmem>>, vector<1x128xf32>
    tpu.vector_store %arg4[%196, %c0_57], %195 {strides = array<i32>} : memref<10x128xf32, #tpu.memory_space<vmem>>, vector<1x128xf32>,
    %c3_i32_58 = arith.constant 3 : i32
    %c3_i32_59 = arith.constant 3 : i32
    %198 = arith.muli %c3_i32_58, %c3_i32_59 : i32
    %c0_i32_60 = arith.constant 0 : i32
    %199 = arith.addi %198, %c0_i32_60 : i32
    %200 = arith.index_cast %199 : i32 to index
    %201 = memref.load %arg1[%200] : memref<27xi32, #tpu.memory_space<smem>>
    %202 = arith.index_cast %201 : i32 to index
    %c0_61 = arith.constant 0 : index
    %203 = vector.load %arg4[%202, %c0_61] : memref<10x128xf32, #tpu.memory_space<vmem>>, vector<1x128xf32>
    %c3_i32_62 = arith.constant 3 : i32
    %204 = arith.muli %c3_i32_58, %c3_i32_62 : i32
    %c1_i32_63 = arith.constant 1 : i32
    %205 = arith.addi %204, %c1_i32_63 : i32
    %206 = arith.index_cast %205 : i32 to index
    %207 = memref.load %arg1[%206] : memref<27xi32, #tpu.memory_space<smem>>
    %208 = arith.index_cast %207 : i32 to index
    %c0_64 = arith.constant 0 : index
    %209 = vector.load %arg4[%208, %c0_64] : memref<10x128xf32, #tpu.memory_space<vmem>>, vector<1x128xf32>
    %c3_i32_65 = arith.constant 3 : i32
    %210 = arith.muli %c3_i32_58, %c3_i32_65 : i32
    %c2_i32_66 = arith.constant 2 : i32
    %211 = arith.addi %210, %c2_i32_66 : i32
    %212 = arith.index_cast %211 : i32 to index
    %213 = memref.load %arg1[%212] : memref<27xi32, #tpu.memory_space<smem>>
    %214 = arith.index_cast %213 : i32 to index
    %c0_67 = arith.constant 0 : index
    %215 = vector.load %arg4[%214, %c0_67] : memref<10x128xf32, #tpu.memory_space<vmem>>, vector<1x128xf32>
    %216 = tpu.concatenate %203, %209, %215 in 0 : vector<1x128xf32>, vector<1x128xf32>, vector<1x128xf32> -> vector<3x128xf32>
    %217 = vector.extract_strided_slice %216 {offsets = [0, 0], sizes = [3, 32], strides = [1, 1]} : vector<3x128xf32> to vector<3x32xf32>
    %218 = vector.extract_strided_slice %216 {offsets = [0, 32], sizes = [3, 32], strides = [1, 1]} : vector<3x128xf32> to vector<3x32xf32>
    %219 = arith.index_cast %c3_i32_58 : i32 to index
    %220 = memref.load %arg0[%219] : memref<9xi32, #tpu.memory_space<smem>>
    %221 = arith.index_cast %220 : i32 to index
    %c0_68 = arith.constant 0 : index
    %222 = vector.load %arg2[%221, %c0_68] : memref<9x128xf32, #tpu.memory_space<vmem>>, vector<1x128xf32>
    %c0_69 = arith.constant 0 : index
    %c0_70 = arith.constant 0 : index
    %223 = vector.load %arg3[%c0_69, %c0_70] : memref<32x128xf32, #tpu.memory_space<vmem>>, vector<32x128xf32>
    %cst_71 = arith.constant dense<0.000000e+00> : vector<3x128xf32>
    %224 = tpu.matmul %218, %223, %cst_71 {dimension_numbers = #tpu.dot_dimension_numbers<[1], [0], [0], [1], [0, 0, 1, 1], [], []>} : vector<3x32xf32>, vector<32x128xf32>, vector<3x128xf32> -> vector<3x128xf32>
    %225 = vector.extract_strided_slice %222 {offsets = [0, 0], sizes = [1, 96], strides = [1, 1]} : vector<1x128xf32> to vector<1x96xf32>
    %226 = vector.extract_strided_slice %224 {offsets = [0, 0], sizes = [3, 96], strides = [1, 1]} : vector<3x128xf32> to vector<3x96xf32>
    %cst_72 = arith.constant dense<0.000000e+00> : vector<96xf32>
    %227 = vector.multi_reduction <add>, %226, %cst_72 [0] : vector<3x96xf32> to vector<96xf32>
    %228 = vector.shape_cast %227 : vector<96xf32> to vector<1x96xf32>
    %229 = arith.addf %225, %228 : vector<1x96xf32>
    %230 = vector.extract_strided_slice %229 {offsets = [0, 0], sizes = [1, 32], strides = [1, 1]} : vector<1x96xf32> to vector<1x32xf32>
    %231 = arith.negf %230 : vector<1x32xf32>
    %232 = math.exp %231 : vector<1x32xf32>
    %cst_73 = arith.constant 1.000000e+00 : f32
    %233 = vector.broadcast %cst_73 : f32 to vector<1x32xf32>
    %234 = arith.addf %233, %232 : vector<1x32xf32>
    %235 = arith.divf %233, %234 : vector<1x32xf32>
    %236 = vector.extract_strided_slice %229 {offsets = [0, 32], sizes = [1, 32], strides = [1, 1]} : vector<1x96xf32> to vector<1x32xf32>
    %237 = arith.negf %236 : vector<1x32xf32>
    %238 = math.exp %237 : vector<1x32xf32>
    %cst_74 = arith.constant 1.000000e+00 : f32
    %239 = vector.broadcast %cst_74 : f32 to vector<1x32xf32>
    %240 = arith.addf %239, %238 : vector<1x32xf32>
    %241 = arith.divf %239, %240 : vector<1x32xf32>
    %242 = vector.extract_strided_slice %229 {offsets = [0, 64], sizes = [1, 32], strides = [1, 1]} : vector<1x96xf32> to vector<1x32xf32>
    %243 = math.tanh %242 : vector<1x32xf32>
    %244 = vector.extract_strided_slice %224 {offsets = [0, 96], sizes = [3, 32], strides = [1, 1]} : vector<3x128xf32> to vector<3x32xf32>
    %245 = vector.extract_strided_slice %222 {offsets = [0, 96], sizes = [1, 32], strides = [1, 1]} : vector<1x128xf32> to vector<1x32xf32>
    %246 = vector.broadcast %245 : vector<1x32xf32> to vector<3x32xf32>
    %247 = arith.addf %244, %246 : vector<3x32xf32>
    %248 = arith.negf %247 : vector<3x32xf32>
    %249 = math.exp %248 : vector<3x32xf32>
    %cst_75 = arith.constant 1.000000e+00 : f32
    %250 = vector.broadcast %cst_75 : f32 to vector<3x32xf32>
    %251 = arith.addf %250, %249 : vector<3x32xf32>
    %252 = arith.divf %250, %251 : vector<3x32xf32>
    %253 = arith.mulf %235, %243 : vector<1x32xf32>
    %254 = arith.mulf %252, %217 : vector<3x32xf32>
    %cst_76 = arith.constant dense<0.000000e+00> : vector<32xf32>
    %255 = vector.multi_reduction <add>, %254, %cst_76 [0] : vector<3x32xf32> to vector<32xf32>
    %256 = vector.shape_cast %255 : vector<32xf32> to vector<1x32xf32>
    %257 = arith.addf %253, %256 : vector<1x32xf32>
    %258 = math.tanh %257 : vector<1x32xf32>
    %259 = arith.mulf %241, %258 : vector<1x32xf32>
    %260 = tpu.concatenate %257, %259, %2 in 1 : vector<1x32xf32>, vector<1x32xf32>, vector<1x64xf32> -> vector<1x128xf32>
    %261 = arith.index_cast %c3_i32_58 : i32 to index
    %c0_77 = arith.constant 0 : index
    %262 = vector.load %arg4[%261, %c0_77] : memref<10x128xf32, #tpu.memory_space<vmem>>, vector<1x128xf32>
    tpu.vector_store %arg4[%261, %c0_77], %260 {strides = array<i32>} : memref<10x128xf32, #tpu.memory_space<vmem>>, vector<1x128xf32>,
    %c4_i32 = arith.constant 4 : i32
    %c3_i32_78 = arith.constant 3 : i32
    %263 = arith.muli %c4_i32, %c3_i32_78 : i32
    %c0_i32_79 = arith.constant 0 : i32
    %264 = arith.addi %263, %c0_i32_79 : i32
    %265 = arith.index_cast %264 : i32 to index
    %266 = memref.load %arg1[%265] : memref<27xi32, #tpu.memory_space<smem>>
    %267 = arith.index_cast %266 : i32 to index
    %c0_80 = arith.constant 0 : index
    %268 = vector.load %arg4[%267, %c0_80] : memref<10x128xf32, #tpu.memory_space<vmem>>, vector<1x128xf32>
    %c3_i32_81 = arith.constant 3 : i32
    %269 = arith.muli %c4_i32, %c3_i32_81 : i32
    %c1_i32_82 = arith.constant 1 : i32
    %270 = arith.addi %269, %c1_i32_82 : i32
    %271 = arith.index_cast %270 : i32 to index
    %272 = memref.load %arg1[%271] : memref<27xi32, #tpu.memory_space<smem>>
    %273 = arith.index_cast %272 : i32 to index
    %c0_83 = arith.constant 0 : index
    %274 = vector.load %arg4[%273, %c0_83] : memref<10x128xf32, #tpu.memory_space<vmem>>, vector<1x128xf32>
    %c3_i32_84 = arith.constant 3 : i32
    %275 = arith.muli %c4_i32, %c3_i32_84 : i32
    %c2_i32_85 = arith.constant 2 : i32
    %276 = arith.addi %275, %c2_i32_85 : i32
    %277 = arith.index_cast %276 : i32 to index
    %278 = memref.load %arg1[%277] : memref<27xi32, #tpu.memory_space<smem>>
    %279 = arith.index_cast %278 : i32 to index
    %c0_86 = arith.constant 0 : index
    %280 = vector.load %arg4[%279, %c0_86] : memref<10x128xf32, #tpu.memory_space<vmem>>, vector<1x128xf32>
    %281 = tpu.concatenate %268, %274, %280 in 0 : vector<1x128xf32>, vector<1x128xf32>, vector<1x128xf32> -> vector<3x128xf32>
    %282 = vector.extract_strided_slice %281 {offsets = [0, 0], sizes = [3, 32], strides = [1, 1]} : vector<3x128xf32> to vector<3x32xf32>
    %283 = vector.extract_strided_slice %281 {offsets = [0, 32], sizes = [3, 32], strides = [1, 1]} : vector<3x128xf32> to vector<3x32xf32>
    %284 = arith.index_cast %c4_i32 : i32 to index
    %285 = memref.load %arg0[%284] : memref<9xi32, #tpu.memory_space<smem>>
    %286 = arith.index_cast %285 : i32 to index
    %c0_87 = arith.constant 0 : index
    %287 = vector.load %arg2[%286, %c0_87] : memref<9x128xf32, #tpu.memory_space<vmem>>, vector<1x128xf32>
    %c0_88 = arith.constant 0 : index
    %c0_89 = arith.constant 0 : index
    %288 = vector.load %arg3[%c0_88, %c0_89] : memref<32x128xf32, #tpu.memory_space<vmem>>, vector<32x128xf32>
    %cst_90 = arith.constant dense<0.000000e+00> : vector<3x128xf32>
    %289 = tpu.matmul %283, %288, %cst_90 {dimension_numbers = #tpu.dot_dimension_numbers<[1], [0], [0], [1], [0, 0, 1, 1], [], []>} : vector<3x32xf32>, vector<32x128xf32>, vector<3x128xf32> -> vector<3x128xf32>
    %290 = vector.extract_strided_slice %287 {offsets = [0, 0], sizes = [1, 96], strides = [1, 1]} : vector<1x128xf32> to vector<1x96xf32>
    %291 = vector.extract_strided_slice %289 {offsets = [0, 0], sizes = [3, 96], strides = [1, 1]} : vector<3x128xf32> to vector<3x96xf32>
    %cst_91 = arith.constant dense<0.000000e+00> : vector<96xf32>
    %292 = vector.multi_reduction <add>, %291, %cst_91 [0] : vector<3x96xf32> to vector<96xf32>
    %293 = vector.shape_cast %292 : vector<96xf32> to vector<1x96xf32>
    %294 = arith.addf %290, %293 : vector<1x96xf32>
    %295 = vector.extract_strided_slice %294 {offsets = [0, 0], sizes = [1, 32], strides = [1, 1]} : vector<1x96xf32> to vector<1x32xf32>
    %296 = arith.negf %295 : vector<1x32xf32>
    %297 = math.exp %296 : vector<1x32xf32>
    %cst_92 = arith.constant 1.000000e+00 : f32
    %298 = vector.broadcast %cst_92 : f32 to vector<1x32xf32>
    %299 = arith.addf %298, %297 : vector<1x32xf32>
    %300 = arith.divf %298, %299 : vector<1x32xf32>
    %301 = vector.extract_strided_slice %294 {offsets = [0, 32], sizes = [1, 32], strides = [1, 1]} : vector<1x96xf32> to vector<1x32xf32>
    %302 = arith.negf %301 : vector<1x32xf32>
    %303 = math.exp %302 : vector<1x32xf32>
    %cst_93 = arith.constant 1.000000e+00 : f32
    %304 = vector.broadcast %cst_93 : f32 to vector<1x32xf32>
    %305 = arith.addf %304, %303 : vector<1x32xf32>
    %306 = arith.divf %304, %305 : vector<1x32xf32>
    %307 = vector.extract_strided_slice %294 {offsets = [0, 64], sizes = [1, 32], strides = [1, 1]} : vector<1x96xf32> to vector<1x32xf32>
    %308 = math.tanh %307 : vector<1x32xf32>
    %309 = vector.extract_strided_slice %289 {offsets = [0, 96], sizes = [3, 32], strides = [1, 1]} : vector<3x128xf32> to vector<3x32xf32>
    %310 = vector.extract_strided_slice %287 {offsets = [0, 96], sizes = [1, 32], strides = [1, 1]} : vector<1x128xf32> to vector<1x32xf32>
    %311 = vector.broadcast %310 : vector<1x32xf32> to vector<3x32xf32>
    %312 = arith.addf %309, %311 : vector<3x32xf32>
    %313 = arith.negf %312 : vector<3x32xf32>
    %314 = math.exp %313 : vector<3x32xf32>
    %cst_94 = arith.constant 1.000000e+00 : f32
    %315 = vector.broadcast %cst_94 : f32 to vector<3x32xf32>
    %316 = arith.addf %315, %314 : vector<3x32xf32>
    %317 = arith.divf %315, %316 : vector<3x32xf32>
    %318 = arith.mulf %300, %308 : vector<1x32xf32>
    %319 = arith.mulf %317, %282 : vector<3x32xf32>
    %cst_95 = arith.constant dense<0.000000e+00> : vector<32xf32>
    %320 = vector.multi_reduction <add>, %319, %cst_95 [0] : vector<3x32xf32> to vector<32xf32>
    %321 = vector.shape_cast %320 : vector<32xf32> to vector<1x32xf32>
    %322 = arith.addf %318, %321 : vector<1x32xf32>
    %323 = math.tanh %322 : vector<1x32xf32>
    %324 = arith.mulf %306, %323 : vector<1x32xf32>
    %325 = tpu.concatenate %322, %324, %2 in 1 : vector<1x32xf32>, vector<1x32xf32>, vector<1x64xf32> -> vector<1x128xf32>
    %326 = arith.index_cast %c4_i32 : i32 to index
    %c0_96 = arith.constant 0 : index
    %327 = vector.load %arg4[%326, %c0_96] : memref<10x128xf32, #tpu.memory_space<vmem>>, vector<1x128xf32>
    tpu.vector_store %arg4[%326, %c0_96], %325 {strides = array<i32>} : memref<10x128xf32, #tpu.memory_space<vmem>>, vector<1x128xf32>,
    %c5_i32 = arith.constant 5 : i32
    %c3_i32_97 = arith.constant 3 : i32
    %328 = arith.muli %c5_i32, %c3_i32_97 : i32
    %c0_i32_98 = arith.constant 0 : i32
    %329 = arith.addi %328, %c0_i32_98 : i32
    %330 = arith.index_cast %329 : i32 to index
    %331 = memref.load %arg1[%330] : memref<27xi32, #tpu.memory_space<smem>>
    %332 = arith.index_cast %331 : i32 to index
    %c0_99 = arith.constant 0 : index
    %333 = vector.load %arg4[%332, %c0_99] : memref<10x128xf32, #tpu.memory_space<vmem>>, vector<1x128xf32>
    %c3_i32_100 = arith.constant 3 : i32
    %334 = arith.muli %c5_i32, %c3_i32_100 : i32
    %c1_i32_101 = arith.constant 1 : i32
    %335 = arith.addi %334, %c1_i32_101 : i32
    %336 = arith.index_cast %335 : i32 to index
    %337 = memref.load %arg1[%336] : memref<27xi32, #tpu.memory_space<smem>>
    %338 = arith.index_cast %337 : i32 to index
    %c0_102 = arith.constant 0 : index
    %339 = vector.load %arg4[%338, %c0_102] : memref<10x128xf32, #tpu.memory_space<vmem>>, vector<1x128xf32>
    %c3_i32_103 = arith.constant 3 : i32
    %340 = arith.muli %c5_i32, %c3_i32_103 : i32
    %c2_i32_104 = arith.constant 2 : i32
    %341 = arith.addi %340, %c2_i32_104 : i32
    %342 = arith.index_cast %341 : i32 to index
    %343 = memref.load %arg1[%342] : memref<27xi32, #tpu.memory_space<smem>>
    %344 = arith.index_cast %343 : i32 to index
    %c0_105 = arith.constant 0 : index
    %345 = vector.load %arg4[%344, %c0_105] : memref<10x128xf32, #tpu.memory_space<vmem>>, vector<1x128xf32>
    %346 = tpu.concatenate %333, %339, %345 in 0 : vector<1x128xf32>, vector<1x128xf32>, vector<1x128xf32> -> vector<3x128xf32>
    %347 = vector.extract_strided_slice %346 {offsets = [0, 0], sizes = [3, 32], strides = [1, 1]} : vector<3x128xf32> to vector<3x32xf32>
    %348 = vector.extract_strided_slice %346 {offsets = [0, 32], sizes = [3, 32], strides = [1, 1]} : vector<3x128xf32> to vector<3x32xf32>
    %349 = arith.index_cast %c5_i32 : i32 to index
    %350 = memref.load %arg0[%349] : memref<9xi32, #tpu.memory_space<smem>>
    %351 = arith.index_cast %350 : i32 to index
    %c0_106 = arith.constant 0 : index
    %352 = vector.load %arg2[%351, %c0_106] : memref<9x128xf32, #tpu.memory_space<vmem>>, vector<1x128xf32>
    %c0_107 = arith.constant 0 : index
    %c0_108 = arith.constant 0 : index
    %353 = vector.load %arg3[%c0_107, %c0_108] : memref<32x128xf32, #tpu.memory_space<vmem>>, vector<32x128xf32>
    %cst_109 = arith.constant dense<0.000000e+00> : vector<3x128xf32>
    %354 = tpu.matmul %348, %353, %cst_109 {dimension_numbers = #tpu.dot_dimension_numbers<[1], [0], [0], [1], [0, 0, 1, 1], [], []>} : vector<3x32xf32>, vector<32x128xf32>, vector<3x128xf32> -> vector<3x128xf32>
    %355 = vector.extract_strided_slice %352 {offsets = [0, 0], sizes = [1, 96], strides = [1, 1]} : vector<1x128xf32> to vector<1x96xf32>
    %356 = vector.extract_strided_slice %354 {offsets = [0, 0], sizes = [3, 96], strides = [1, 1]} : vector<3x128xf32> to vector<3x96xf32>
    %cst_110 = arith.constant dense<0.000000e+00> : vector<96xf32>
    %357 = vector.multi_reduction <add>, %356, %cst_110 [0] : vector<3x96xf32> to vector<96xf32>
    %358 = vector.shape_cast %357 : vector<96xf32> to vector<1x96xf32>
    %359 = arith.addf %355, %358 : vector<1x96xf32>
    %360 = vector.extract_strided_slice %359 {offsets = [0, 0], sizes = [1, 32], strides = [1, 1]} : vector<1x96xf32> to vector<1x32xf32>
    %361 = arith.negf %360 : vector<1x32xf32>
    %362 = math.exp %361 : vector<1x32xf32>
    %cst_111 = arith.constant 1.000000e+00 : f32
    %363 = vector.broadcast %cst_111 : f32 to vector<1x32xf32>
    %364 = arith.addf %363, %362 : vector<1x32xf32>
    %365 = arith.divf %363, %364 : vector<1x32xf32>
    %366 = vector.extract_strided_slice %359 {offsets = [0, 32], sizes = [1, 32], strides = [1, 1]} : vector<1x96xf32> to vector<1x32xf32>
    %367 = arith.negf %366 : vector<1x32xf32>
    %368 = math.exp %367 : vector<1x32xf32>
    %cst_112 = arith.constant 1.000000e+00 : f32
    %369 = vector.broadcast %cst_112 : f32 to vector<1x32xf32>
    %370 = arith.addf %369, %368 : vector<1x32xf32>
    %371 = arith.divf %369, %370 : vector<1x32xf32>
    %372 = vector.extract_strided_slice %359 {offsets = [0, 64], sizes = [1, 32], strides = [1, 1]} : vector<1x96xf32> to vector<1x32xf32>
    %373 = math.tanh %372 : vector<1x32xf32>
    %374 = vector.extract_strided_slice %354 {offsets = [0, 96], sizes = [3, 32], strides = [1, 1]} : vector<3x128xf32> to vector<3x32xf32>
    %375 = vector.extract_strided_slice %352 {offsets = [0, 96], sizes = [1, 32], strides = [1, 1]} : vector<1x128xf32> to vector<1x32xf32>
    %376 = vector.broadcast %375 : vector<1x32xf32> to vector<3x32xf32>
    %377 = arith.addf %374, %376 : vector<3x32xf32>
    %378 = arith.negf %377 : vector<3x32xf32>
    %379 = math.exp %378 : vector<3x32xf32>
    %cst_113 = arith.constant 1.000000e+00 : f32
    %380 = vector.broadcast %cst_113 : f32 to vector<3x32xf32>
    %381 = arith.addf %380, %379 : vector<3x32xf32>
    %382 = arith.divf %380, %381 : vector<3x32xf32>
    %383 = arith.mulf %365, %373 : vector<1x32xf32>
    %384 = arith.mulf %382, %347 : vector<3x32xf32>
    %cst_114 = arith.constant dense<0.000000e+00> : vector<32xf32>
    %385 = vector.multi_reduction <add>, %384, %cst_114 [0] : vector<3x32xf32> to vector<32xf32>
    %386 = vector.shape_cast %385 : vector<32xf32> to vector<1x32xf32>
    %387 = arith.addf %383, %386 : vector<1x32xf32>
    %388 = math.tanh %387 : vector<1x32xf32>
    %389 = arith.mulf %371, %388 : vector<1x32xf32>
    %390 = tpu.concatenate %387, %389, %2 in 1 : vector<1x32xf32>, vector<1x32xf32>, vector<1x64xf32> -> vector<1x128xf32>
    %391 = arith.index_cast %c5_i32 : i32 to index
    %c0_115 = arith.constant 0 : index
    %392 = vector.load %arg4[%391, %c0_115] : memref<10x128xf32, #tpu.memory_space<vmem>>, vector<1x128xf32>
    tpu.vector_store %arg4[%391, %c0_115], %390 {strides = array<i32>} : memref<10x128xf32, #tpu.memory_space<vmem>>, vector<1x128xf32>,
    %c6_i32 = arith.constant 6 : i32
    %c3_i32_116 = arith.constant 3 : i32
    %393 = arith.muli %c6_i32, %c3_i32_116 : i32
    %c0_i32_117 = arith.constant 0 : i32
    %394 = arith.addi %393, %c0_i32_117 : i32
    %395 = arith.index_cast %394 : i32 to index
    %396 = memref.load %arg1[%395] : memref<27xi32, #tpu.memory_space<smem>>
    %397 = arith.index_cast %396 : i32 to index
    %c0_118 = arith.constant 0 : index
    %398 = vector.load %arg4[%397, %c0_118] : memref<10x128xf32, #tpu.memory_space<vmem>>, vector<1x128xf32>
    %c3_i32_119 = arith.constant 3 : i32
    %399 = arith.muli %c6_i32, %c3_i32_119 : i32
    %c1_i32_120 = arith.constant 1 : i32
    %400 = arith.addi %399, %c1_i32_120 : i32
    %401 = arith.index_cast %400 : i32 to index
    %402 = memref.load %arg1[%401] : memref<27xi32, #tpu.memory_space<smem>>
    %403 = arith.index_cast %402 : i32 to index
    %c0_121 = arith.constant 0 : index
    %404 = vector.load %arg4[%403, %c0_121] : memref<10x128xf32, #tpu.memory_space<vmem>>, vector<1x128xf32>
    %c3_i32_122 = arith.constant 3 : i32
    %405 = arith.muli %c6_i32, %c3_i32_122 : i32
    %c2_i32_123 = arith.constant 2 : i32
    %406 = arith.addi %405, %c2_i32_123 : i32
    %407 = arith.index_cast %406 : i32 to index
    %408 = memref.load %arg1[%407] : memref<27xi32, #tpu.memory_space<smem>>
    %409 = arith.index_cast %408 : i32 to index
    %c0_124 = arith.constant 0 : index
    %410 = vector.load %arg4[%409, %c0_124] : memref<10x128xf32, #tpu.memory_space<vmem>>, vector<1x128xf32>
    %411 = tpu.concatenate %398, %404, %410 in 0 : vector<1x128xf32>, vector<1x128xf32>, vector<1x128xf32> -> vector<3x128xf32>
    %412 = vector.extract_strided_slice %411 {offsets = [0, 0], sizes = [3, 32], strides = [1, 1]} : vector<3x128xf32> to vector<3x32xf32>
    %413 = vector.extract_strided_slice %411 {offsets = [0, 32], sizes = [3, 32], strides = [1, 1]} : vector<3x128xf32> to vector<3x32xf32>
    %414 = arith.index_cast %c6_i32 : i32 to index
    %415 = memref.load %arg0[%414] : memref<9xi32, #tpu.memory_space<smem>>
    %416 = arith.index_cast %415 : i32 to index
    %c0_125 = arith.constant 0 : index
    %417 = vector.load %arg2[%416, %c0_125] : memref<9x128xf32, #tpu.memory_space<vmem>>, vector<1x128xf32>
    %c0_126 = arith.constant 0 : index
    %c0_127 = arith.constant 0 : index
    %418 = vector.load %arg3[%c0_126, %c0_127] : memref<32x128xf32, #tpu.memory_space<vmem>>, vector<32x128xf32>
    %cst_128 = arith.constant dense<0.000000e+00> : vector<3x128xf32>
    %419 = tpu.matmul %413, %418, %cst_128 {dimension_numbers = #tpu.dot_dimension_numbers<[1], [0], [0], [1], [0, 0, 1, 1], [], []>} : vector<3x32xf32>, vector<32x128xf32>, vector<3x128xf32> -> vector<3x128xf32>
    %420 = vector.extract_strided_slice %417 {offsets = [0, 0], sizes = [1, 96], strides = [1, 1]} : vector<1x128xf32> to vector<1x96xf32>
    %421 = vector.extract_strided_slice %419 {offsets = [0, 0], sizes = [3, 96], strides = [1, 1]} : vector<3x128xf32> to vector<3x96xf32>
    %cst_129 = arith.constant dense<0.000000e+00> : vector<96xf32>
    %422 = vector.multi_reduction <add>, %421, %cst_129 [0] : vector<3x96xf32> to vector<96xf32>
    %423 = vector.shape_cast %422 : vector<96xf32> to vector<1x96xf32>
    %424 = arith.addf %420, %423 : vector<1x96xf32>
    %425 = vector.extract_strided_slice %424 {offsets = [0, 0], sizes = [1, 32], strides = [1, 1]} : vector<1x96xf32> to vector<1x32xf32>
    %426 = arith.negf %425 : vector<1x32xf32>
    %427 = math.exp %426 : vector<1x32xf32>
    %cst_130 = arith.constant 1.000000e+00 : f32
    %428 = vector.broadcast %cst_130 : f32 to vector<1x32xf32>
    %429 = arith.addf %428, %427 : vector<1x32xf32>
    %430 = arith.divf %428, %429 : vector<1x32xf32>
    %431 = vector.extract_strided_slice %424 {offsets = [0, 32], sizes = [1, 32], strides = [1, 1]} : vector<1x96xf32> to vector<1x32xf32>
    %432 = arith.negf %431 : vector<1x32xf32>
    %433 = math.exp %432 : vector<1x32xf32>
    %cst_131 = arith.constant 1.000000e+00 : f32
    %434 = vector.broadcast %cst_131 : f32 to vector<1x32xf32>
    %435 = arith.addf %434, %433 : vector<1x32xf32>
    %436 = arith.divf %434, %435 : vector<1x32xf32>
    %437 = vector.extract_strided_slice %424 {offsets = [0, 64], sizes = [1, 32], strides = [1, 1]} : vector<1x96xf32> to vector<1x32xf32>
    %438 = math.tanh %437 : vector<1x32xf32>
    %439 = vector.extract_strided_slice %419 {offsets = [0, 96], sizes = [3, 32], strides = [1, 1]} : vector<3x128xf32> to vector<3x32xf32>
    %440 = vector.extract_strided_slice %417 {offsets = [0, 96], sizes = [1, 32], strides = [1, 1]} : vector<1x128xf32> to vector<1x32xf32>
    %441 = vector.broadcast %440 : vector<1x32xf32> to vector<3x32xf32>
    %442 = arith.addf %439, %441 : vector<3x32xf32>
    %443 = arith.negf %442 : vector<3x32xf32>
    %444 = math.exp %443 : vector<3x32xf32>
    %cst_132 = arith.constant 1.000000e+00 : f32
    %445 = vector.broadcast %cst_132 : f32 to vector<3x32xf32>
    %446 = arith.addf %445, %444 : vector<3x32xf32>
    %447 = arith.divf %445, %446 : vector<3x32xf32>
    %448 = arith.mulf %430, %438 : vector<1x32xf32>
    %449 = arith.mulf %447, %412 : vector<3x32xf32>
    %cst_133 = arith.constant dense<0.000000e+00> : vector<32xf32>
    %450 = vector.multi_reduction <add>, %449, %cst_133 [0] : vector<3x32xf32> to vector<32xf32>
    %451 = vector.shape_cast %450 : vector<32xf32> to vector<1x32xf32>
    %452 = arith.addf %448, %451 : vector<1x32xf32>
    %453 = math.tanh %452 : vector<1x32xf32>
    %454 = arith.mulf %436, %453 : vector<1x32xf32>
    %455 = tpu.concatenate %452, %454, %2 in 1 : vector<1x32xf32>, vector<1x32xf32>, vector<1x64xf32> -> vector<1x128xf32>
    %456 = arith.index_cast %c6_i32 : i32 to index
    %c0_134 = arith.constant 0 : index
    %457 = vector.load %arg4[%456, %c0_134] : memref<10x128xf32, #tpu.memory_space<vmem>>, vector<1x128xf32>
    tpu.vector_store %arg4[%456, %c0_134], %455 {strides = array<i32>} : memref<10x128xf32, #tpu.memory_space<vmem>>, vector<1x128xf32>,
    %c7_i32 = arith.constant 7 : i32
    %c3_i32_135 = arith.constant 3 : i32
    %458 = arith.muli %c7_i32, %c3_i32_135 : i32
    %c0_i32_136 = arith.constant 0 : i32
    %459 = arith.addi %458, %c0_i32_136 : i32
    %460 = arith.index_cast %459 : i32 to index
    %461 = memref.load %arg1[%460] : memref<27xi32, #tpu.memory_space<smem>>
    %462 = arith.index_cast %461 : i32 to index
    %c0_137 = arith.constant 0 : index
    %463 = vector.load %arg4[%462, %c0_137] : memref<10x128xf32, #tpu.memory_space<vmem>>, vector<1x128xf32>
    %c3_i32_138 = arith.constant 3 : i32
    %464 = arith.muli %c7_i32, %c3_i32_138 : i32
    %c1_i32_139 = arith.constant 1 : i32
    %465 = arith.addi %464, %c1_i32_139 : i32
    %466 = arith.index_cast %465 : i32 to index
    %467 = memref.load %arg1[%466] : memref<27xi32, #tpu.memory_space<smem>>
    %468 = arith.index_cast %467 : i32 to index
    %c0_140 = arith.constant 0 : index
    %469 = vector.load %arg4[%468, %c0_140] : memref<10x128xf32, #tpu.memory_space<vmem>>, vector<1x128xf32>
    %c3_i32_141 = arith.constant 3 : i32
    %470 = arith.muli %c7_i32, %c3_i32_141 : i32
    %c2_i32_142 = arith.constant 2 : i32
    %471 = arith.addi %470, %c2_i32_142 : i32
    %472 = arith.index_cast %471 : i32 to index
    %473 = memref.load %arg1[%472] : memref<27xi32, #tpu.memory_space<smem>>
    %474 = arith.index_cast %473 : i32 to index
    %c0_143 = arith.constant 0 : index
    %475 = vector.load %arg4[%474, %c0_143] : memref<10x128xf32, #tpu.memory_space<vmem>>, vector<1x128xf32>
    %476 = tpu.concatenate %463, %469, %475 in 0 : vector<1x128xf32>, vector<1x128xf32>, vector<1x128xf32> -> vector<3x128xf32>
    %477 = vector.extract_strided_slice %476 {offsets = [0, 0], sizes = [3, 32], strides = [1, 1]} : vector<3x128xf32> to vector<3x32xf32>
    %478 = vector.extract_strided_slice %476 {offsets = [0, 32], sizes = [3, 32], strides = [1, 1]} : vector<3x128xf32> to vector<3x32xf32>
    %479 = arith.index_cast %c7_i32 : i32 to index
    %480 = memref.load %arg0[%479] : memref<9xi32, #tpu.memory_space<smem>>
    %481 = arith.index_cast %480 : i32 to index
    %c0_144 = arith.constant 0 : index
    %482 = vector.load %arg2[%481, %c0_144] : memref<9x128xf32, #tpu.memory_space<vmem>>, vector<1x128xf32>
    %c0_145 = arith.constant 0 : index
    %c0_146 = arith.constant 0 : index
    %483 = vector.load %arg3[%c0_145, %c0_146] : memref<32x128xf32, #tpu.memory_space<vmem>>, vector<32x128xf32>
    %cst_147 = arith.constant dense<0.000000e+00> : vector<3x128xf32>
    %484 = tpu.matmul %478, %483, %cst_147 {dimension_numbers = #tpu.dot_dimension_numbers<[1], [0], [0], [1], [0, 0, 1, 1], [], []>} : vector<3x32xf32>, vector<32x128xf32>, vector<3x128xf32> -> vector<3x128xf32>
    %485 = vector.extract_strided_slice %482 {offsets = [0, 0], sizes = [1, 96], strides = [1, 1]} : vector<1x128xf32> to vector<1x96xf32>
    %486 = vector.extract_strided_slice %484 {offsets = [0, 0], sizes = [3, 96], strides = [1, 1]} : vector<3x128xf32> to vector<3x96xf32>
    %cst_148 = arith.constant dense<0.000000e+00> : vector<96xf32>
    %487 = vector.multi_reduction <add>, %486, %cst_148 [0] : vector<3x96xf32> to vector<96xf32>
    %488 = vector.shape_cast %487 : vector<96xf32> to vector<1x96xf32>
    %489 = arith.addf %485, %488 : vector<1x96xf32>
    %490 = vector.extract_strided_slice %489 {offsets = [0, 0], sizes = [1, 32], strides = [1, 1]} : vector<1x96xf32> to vector<1x32xf32>
    %491 = arith.negf %490 : vector<1x32xf32>
    %492 = math.exp %491 : vector<1x32xf32>
    %cst_149 = arith.constant 1.000000e+00 : f32
    %493 = vector.broadcast %cst_149 : f32 to vector<1x32xf32>
    %494 = arith.addf %493, %492 : vector<1x32xf32>
    %495 = arith.divf %493, %494 : vector<1x32xf32>
    %496 = vector.extract_strided_slice %489 {offsets = [0, 32], sizes = [1, 32], strides = [1, 1]} : vector<1x96xf32> to vector<1x32xf32>
    %497 = arith.negf %496 : vector<1x32xf32>
    %498 = math.exp %497 : vector<1x32xf32>
    %cst_150 = arith.constant 1.000000e+00 : f32
    %499 = vector.broadcast %cst_150 : f32 to vector<1x32xf32>
    %500 = arith.addf %499, %498 : vector<1x32xf32>
    %501 = arith.divf %499, %500 : vector<1x32xf32>
    %502 = vector.extract_strided_slice %489 {offsets = [0, 64], sizes = [1, 32], strides = [1, 1]} : vector<1x96xf32> to vector<1x32xf32>
    %503 = math.tanh %502 : vector<1x32xf32>
    %504 = vector.extract_strided_slice %484 {offsets = [0, 96], sizes = [3, 32], strides = [1, 1]} : vector<3x128xf32> to vector<3x32xf32>
    %505 = vector.extract_strided_slice %482 {offsets = [0, 96], sizes = [1, 32], strides = [1, 1]} : vector<1x128xf32> to vector<1x32xf32>
    %506 = vector.broadcast %505 : vector<1x32xf32> to vector<3x32xf32>
    %507 = arith.addf %504, %506 : vector<3x32xf32>
    %508 = arith.negf %507 : vector<3x32xf32>
    %509 = math.exp %508 : vector<3x32xf32>
    %cst_151 = arith.constant 1.000000e+00 : f32
    %510 = vector.broadcast %cst_151 : f32 to vector<3x32xf32>
    %511 = arith.addf %510, %509 : vector<3x32xf32>
    %512 = arith.divf %510, %511 : vector<3x32xf32>
    %513 = arith.mulf %495, %503 : vector<1x32xf32>
    %514 = arith.mulf %512, %477 : vector<3x32xf32>
    %cst_152 = arith.constant dense<0.000000e+00> : vector<32xf32>
    %515 = vector.multi_reduction <add>, %514, %cst_152 [0] : vector<3x32xf32> to vector<32xf32>
    %516 = vector.shape_cast %515 : vector<32xf32> to vector<1x32xf32>
    %517 = arith.addf %513, %516 : vector<1x32xf32>
    %518 = math.tanh %517 : vector<1x32xf32>
    %519 = arith.mulf %501, %518 : vector<1x32xf32>
    %520 = tpu.concatenate %517, %519, %2 in 1 : vector<1x32xf32>, vector<1x32xf32>, vector<1x64xf32> -> vector<1x128xf32>
    %521 = arith.index_cast %c7_i32 : i32 to index
    %c0_153 = arith.constant 0 : index
    %522 = vector.load %arg4[%521, %c0_153] : memref<10x128xf32, #tpu.memory_space<vmem>>, vector<1x128xf32>
    tpu.vector_store %arg4[%521, %c0_153], %520 {strides = array<i32>} : memref<10x128xf32, #tpu.memory_space<vmem>>, vector<1x128xf32>,
    %c8_i32 = arith.constant 8 : i32
    %c3_i32_154 = arith.constant 3 : i32
    %523 = arith.muli %c8_i32, %c3_i32_154 : i32
    %c0_i32_155 = arith.constant 0 : i32
    %524 = arith.addi %523, %c0_i32_155 : i32
    %525 = arith.index_cast %524 : i32 to index
    %526 = memref.load %arg1[%525] : memref<27xi32, #tpu.memory_space<smem>>
    %527 = arith.index_cast %526 : i32 to index
    %c0_156 = arith.constant 0 : index
    %528 = vector.load %arg4[%527, %c0_156] : memref<10x128xf32, #tpu.memory_space<vmem>>, vector<1x128xf32>
    %c3_i32_157 = arith.constant 3 : i32
    %529 = arith.muli %c8_i32, %c3_i32_157 : i32
    %c1_i32_158 = arith.constant 1 : i32
    %530 = arith.addi %529, %c1_i32_158 : i32
    %531 = arith.index_cast %530 : i32 to index
    %532 = memref.load %arg1[%531] : memref<27xi32, #tpu.memory_space<smem>>
    %533 = arith.index_cast %532 : i32 to index
    %c0_159 = arith.constant 0 : index
    %534 = vector.load %arg4[%533, %c0_159] : memref<10x128xf32, #tpu.memory_space<vmem>>, vector<1x128xf32>
    %c3_i32_160 = arith.constant 3 : i32
    %535 = arith.muli %c8_i32, %c3_i32_160 : i32
    %c2_i32_161 = arith.constant 2 : i32
    %536 = arith.addi %535, %c2_i32_161 : i32
    %537 = arith.index_cast %536 : i32 to index
    %538 = memref.load %arg1[%537] : memref<27xi32, #tpu.memory_space<smem>>
    %539 = arith.index_cast %538 : i32 to index
    %c0_162 = arith.constant 0 : index
    %540 = vector.load %arg4[%539, %c0_162] : memref<10x128xf32, #tpu.memory_space<vmem>>, vector<1x128xf32>
    %541 = tpu.concatenate %528, %534, %540 in 0 : vector<1x128xf32>, vector<1x128xf32>, vector<1x128xf32> -> vector<3x128xf32>
    %542 = vector.extract_strided_slice %541 {offsets = [0, 0], sizes = [3, 32], strides = [1, 1]} : vector<3x128xf32> to vector<3x32xf32>
    %543 = vector.extract_strided_slice %541 {offsets = [0, 32], sizes = [3, 32], strides = [1, 1]} : vector<3x128xf32> to vector<3x32xf32>
    %544 = arith.index_cast %c8_i32 : i32 to index
    %545 = memref.load %arg0[%544] : memref<9xi32, #tpu.memory_space<smem>>
    %546 = arith.index_cast %545 : i32 to index
    %c0_163 = arith.constant 0 : index
    %547 = vector.load %arg2[%546, %c0_163] : memref<9x128xf32, #tpu.memory_space<vmem>>, vector<1x128xf32>
    %c0_164 = arith.constant 0 : index
    %c0_165 = arith.constant 0 : index
    %548 = vector.load %arg3[%c0_164, %c0_165] : memref<32x128xf32, #tpu.memory_space<vmem>>, vector<32x128xf32>
    %cst_166 = arith.constant dense<0.000000e+00> : vector<3x128xf32>
    %549 = tpu.matmul %543, %548, %cst_166 {dimension_numbers = #tpu.dot_dimension_numbers<[1], [0], [0], [1], [0, 0, 1, 1], [], []>} : vector<3x32xf32>, vector<32x128xf32>, vector<3x128xf32> -> vector<3x128xf32>
    %550 = vector.extract_strided_slice %547 {offsets = [0, 0], sizes = [1, 96], strides = [1, 1]} : vector<1x128xf32> to vector<1x96xf32>
    %551 = vector.extract_strided_slice %549 {offsets = [0, 0], sizes = [3, 96], strides = [1, 1]} : vector<3x128xf32> to vector<3x96xf32>
    %cst_167 = arith.constant dense<0.000000e+00> : vector<96xf32>
    %552 = vector.multi_reduction <add>, %551, %cst_167 [0] : vector<3x96xf32> to vector<96xf32>
    %553 = vector.shape_cast %552 : vector<96xf32> to vector<1x96xf32>
    %554 = arith.addf %550, %553 : vector<1x96xf32>
    %555 = vector.extract_strided_slice %554 {offsets = [0, 0], sizes = [1, 32], strides = [1, 1]} : vector<1x96xf32> to vector<1x32xf32>
    %556 = arith.negf %555 : vector<1x32xf32>
    %557 = math.exp %556 : vector<1x32xf32>
    %cst_168 = arith.constant 1.000000e+00 : f32
    %558 = vector.broadcast %cst_168 : f32 to vector<1x32xf32>
    %559 = arith.addf %558, %557 : vector<1x32xf32>
    %560 = arith.divf %558, %559 : vector<1x32xf32>
    %561 = vector.extract_strided_slice %554 {offsets = [0, 32], sizes = [1, 32], strides = [1, 1]} : vector<1x96xf32> to vector<1x32xf32>
    %562 = arith.negf %561 : vector<1x32xf32>
    %563 = math.exp %562 : vector<1x32xf32>
    %cst_169 = arith.constant 1.000000e+00 : f32
    %564 = vector.broadcast %cst_169 : f32 to vector<1x32xf32>
    %565 = arith.addf %564, %563 : vector<1x32xf32>
    %566 = arith.divf %564, %565 : vector<1x32xf32>
    %567 = vector.extract_strided_slice %554 {offsets = [0, 64], sizes = [1, 32], strides = [1, 1]} : vector<1x96xf32> to vector<1x32xf32>
    %568 = math.tanh %567 : vector<1x32xf32>
    %569 = vector.extract_strided_slice %549 {offsets = [0, 96], sizes = [3, 32], strides = [1, 1]} : vector<3x128xf32> to vector<3x32xf32>
    %570 = vector.extract_strided_slice %547 {offsets = [0, 96], sizes = [1, 32], strides = [1, 1]} : vector<1x128xf32> to vector<1x32xf32>
    %571 = vector.broadcast %570 : vector<1x32xf32> to vector<3x32xf32>
    %572 = arith.addf %569, %571 : vector<3x32xf32>
    %573 = arith.negf %572 : vector<3x32xf32>
    %574 = math.exp %573 : vector<3x32xf32>
    %cst_170 = arith.constant 1.000000e+00 : f32
    %575 = vector.broadcast %cst_170 : f32 to vector<3x32xf32>
    %576 = arith.addf %575, %574 : vector<3x32xf32>
    %577 = arith.divf %575, %576 : vector<3x32xf32>
    %578 = arith.mulf %560, %568 : vector<1x32xf32>
    %579 = arith.mulf %577, %542 : vector<3x32xf32>
    %cst_171 = arith.constant dense<0.000000e+00> : vector<32xf32>
    %580 = vector.multi_reduction <add>, %579, %cst_171 [0] : vector<3x32xf32> to vector<32xf32>
    %581 = vector.shape_cast %580 : vector<32xf32> to vector<1x32xf32>
    %582 = arith.addf %578, %581 : vector<1x32xf32>
    %583 = math.tanh %582 : vector<1x32xf32>
    %584 = arith.mulf %566, %583 : vector<1x32xf32>
    %585 = tpu.concatenate %582, %584, %2 in 1 : vector<1x32xf32>, vector<1x32xf32>, vector<1x64xf32> -> vector<1x128xf32>
    %586 = arith.index_cast %c8_i32 : i32 to index
    %c0_172 = arith.constant 0 : index
    %587 = vector.load %arg4[%586, %c0_172] : memref<10x128xf32, #tpu.memory_space<vmem>>, vector<1x128xf32>
    tpu.vector_store %arg4[%586, %c0_172], %585 {strides = array<i32>} : memref<10x128xf32, #tpu.memory_space<vmem>>, vector<1x128xf32>,
    %c9_i32 = arith.constant 9 : i32
    return
  }
}

</mosaic_0001>

<llo_original>
// kernel: run.1
$region0: #{run.1}
  #allocation0 [shape = 'u32[]', space=smem, size = 0x4, offset = 0x4, fixed_abs, tag = 'smem constant byte address 0x4 - core index']
  #allocation1 [shape = 'u32[144,128]{1,0:T(1,128)}', space=vmem, size = 0x12000, scoped, tag = 'internal scratch']
  %s0 = inlined_call_operand.vmem [shape: s32[9], index: 0, kind: input, shape index: {}]
  %s1 = inlined_call_operand.vmem [shape: s32[27], index: 1, kind: input, shape index: {}]
  %s2 = inlined_call_operand.vmem [shape: f32[9,128], index: 2, kind: input, shape index: {}]
  %s3 = inlined_call_operand.vmem [shape: f32[32,128], index: 3, kind: input, shape index: {}]
  %s4 = inlined_call_operand.hbm [shape: f32[10,128], index: 4, kind: output, shape index: {}]
  %s5 = sld [smem:[#allocation0]]
  $region34: #{run.1} parent=0
    _
  %s7 = ssub.s32 1, %s5
  %s8 = scalar_select 0, %s7, %s5
  $region1: #{run.1} parent=0
    #allocation2 [shape = 'u8[512]{0}', space=smem, size = 0x200, scoped, tag = 'input window, operand 0, single buffered']
    #allocation3 [shape = 's32[1]{0}', space=sflag, size = 0x4, scoped, tag = 'scoped memory for run.1']
    #allocation4 [shape = 's32[1]{0}', space=sflag, size = 0x4, scoped, tag = 'scoped memory for run.1']
    #allocation5 [shape = 'u8[512]{0}', space=smem, size = 0x200, scoped, tag = 'input window, operand 1, single buffered']
    #allocation6 [shape = 's32[1]{0}', space=sflag, size = 0x4, scoped, tag = 'scoped memory for run.1']
    #allocation7 [shape = 'u8[8192]{0}', space=vmem, size = 0x2000, scoped, tag = 'output window, operand 0, single buffered']
    %9 = vsyncpa [#allocation4], 0
    %10 = vsyncpa [#allocation6], 0
    %11 = vsyncpa [#allocation3], 0
    // Predicated region
    $region2: #{run.1} parent=1 // pred_check
      _
    $region3: #{run.1} parent=1 // pred_check_branch
      %13 = sbr.rel (0) target = $region5
    $region4: #{run.1} parent=1 // pred_region
      %s15 = ssub.s32 16, 16
      %16 = vsyncadd [#allocation4], %s15
      %s18 = sshll.u32 %s0, 4
      %s19 = int_to_ptr.vmem [resolvable:$true] %s18
      %21 = dma.vmem_to_smem %s19, 16, [#allocation2], [#allocation4]
    $region5: #{run.1} parent=1 // pred_fallthru
      _
    // Predicated region
    $region6: #{run.1} parent=1 // pred_check
      _
    $region7: #{run.1} parent=1 // pred_check_branch
      %23 = sbr.rel (0) target = $region9
    $region8: #{run.1} parent=1 // pred_region
      %s25 = ssub.s32 16, 16
      %26 = vsyncadd [#allocation6], %s25
      %s28 = sshll.u32 %s1, 4
      %s29 = int_to_ptr.vmem [resolvable:$true] %s28
      %31 = dma.vmem_to_smem %s29, 16, [#allocation5], [#allocation6]
    $region9: #{run.1} parent=1 // pred_fallthru
      _
    // Predicated region
    $region10: #{run.1} parent=1 // pred_check
      _
    $region11: #{run.1} parent=1 // pred_check_branch
      %33 = sbr.rel (0) target = $region13
    $region12: #{run.1} parent=1 // pred_region
      _
    $region13: #{run.1} parent=1 // pred_fallthru
      _
    // Predicated region
    $region14: #{run.1} parent=1 // pred_check
      _
    $region15: #{run.1} parent=1 // pred_check_branch
      %35 = sbr.rel (0) target = $region17
    $region16: #{run.1} parent=1 // pred_region
      _
    $region17: #{run.1} parent=1 // pred_fallthru
      _
    // Predicated region
    $region18: #{run.1} parent=1 // pred_check
      _
    $region19: #{run.1} parent=1 // pred_check_branch
      %37 = sbr.rel (0) target = $region21
    $region20: #{run.1} parent=1 // pred_region
      %38 = dma.done [#allocation4], 16
    $region21: #{run.1} parent=1 // pred_fallthru
      _
    // Predicated region
    $region22: #{run.1} parent=1 // pred_check
      _
    $region23: #{run.1} parent=1 // pred_check_branch
      %40 = sbr.rel (0) target = $region25
    $region24: #{run.1} parent=1 // pred_region
      %41 = dma.done [#allocation6], 16
    $region25: #{run.1} parent=1 // pred_fallthru
      _
    %42 = sfence
    %43 = vst [vmem:[#allocation7] sm:$0xff] 0.0
    %44 = vst [vmem:[#allocation7 + $0x8] sm:$0x3] 0.0
    %s45 = sld [smem:[#allocation5]]
    %s46 = scalar_lea.vmem [#allocation7], %s45
    %v47 = vld [vmem:[%s46] sm:$0x1]
    %s48 = sld [smem:[#allocation5 + $0x1]]
    %s49 = scalar_lea.vmem [#allocation7], %s48
    %v50 = vld [vmem:[%s49] sm:$0x1]
    %s51 = sld [smem:[#allocation5 + $0x2]]
    %s52 = scalar_lea.vmem [#allocation7], %s51
    %v53 = vld [vmem:[%s52] sm:$0x1]
    %v55 = vrot.slane %v50, 7
    %v58 = vrot.slane %v53, 6
    %vm60 = vcmask 1040384
    %v61 = vsel %vm60, %v47, %v55
    %vm62 = vcmask 1041408
    %v63 = vsel %vm62, %v61, %v58
    %s64 = sld [smem:[#allocation2]]
    %s65 = scalar_lea.vmem %s2, %s64
    %v66 = vld [vmem:[%s65] sm:$0x1]
    %v67 = vld [vmem:[%s3] sm:$0xff]
    %v68 = vld [vmem:[%s3 + $0x8] sm:$0xff]
    %v69 = vld [vmem:[%s3 + $0x10] sm:$0xff]
    %v70 = vld [vmem:[%s3 + $0x18] sm:$0xff]
    %72 = vrot.lane.b32.xlu0 %v63, 96
    %v73 = vpop.permute.xlu0 %72
    %vm74 = vcmask 261120
    %v75 = vsel %vm74, %v73, 0
    %77 = vmatprep.subr.mxu0 0.0
    %78 = vmatpush1.msra.mxu0 %v67
    %79 = vmatprep.subr.mxu0 0.0
    %80 = vmatpush1.msra.mxu0 %v68
    %81 = vmatprep.subr.mxu0 0.0
    %82 = vmatpush1.msra.mxu0 %v69
    %83 = vmatprep.subr.mxu0 0.0
    %84 = vmatpush1.msra.mxu0 %v70
    %85 = vmatprep.subr.mxu0 0.0
    %86 = vmatpush1.msra.mxu0 0.0
    %87 = vmatprep.subr.mxu0 0.0
    %88 = vmatpush1.msra.mxu0 0.0
    %89 = vmatprep.subr.mxu0 0.0
    %90 = vmatpush1.msra.mxu0 0.0
    %91 = vmatprep.subr.mxu0 0.0
    %92 = vmatpush1.msra.mxu0 0.0
    %93 = vmatprep.subr.mxu0 0.0
    %94 = vmatpush1.msra.mxu0 0.0
    %95 = vmatprep.subr.mxu0 0.0
    %96 = vmatpush1.msra.mxu0 0.0
    %97 = vmatprep.subr.mxu0 0.0
    %98 = vmatpush1.msra.mxu0 0.0
    %99 = vmatprep.subr.mxu0 0.0
    %100 = vmatpush1.msra.mxu0 0.0
    %101 = vmatprep.subr.mxu0 0.0
    %102 = vmatpush1.msra.mxu0 0.0
    %103 = vmatprep.subr.mxu0 0.0
    %104 = vmatpush1.msra.mxu0 0.0
    %105 = vmatprep.subr.mxu0 0.0
    %106 = vmatpush1.msra.mxu0 0.0
    %107 = vmatprep.subr.mxu0 0.0
    %108 = vmatpush1.msra.mxu0 0.0
    %109 = vmatprep.subr.mxu0 0.0
    %110 = vmatpush1.msra.mxu0 0.0
    %111 = vmatprep.subr.mxu0 0.0
    %112 = vmatpush1.msra.mxu0 0.0
    %113 = vmatprep.subr.mxu0 0.0
    %114 = vmatpush1.msra.mxu0 0.0
    %115 = vmatprep.subr.mxu0 0.0
    %116 = vmatpush1.msra.mxu0 0.0
    %117 = vmatprep.subr.mxu0 0.0
    %118 = vmatpush1.msra.mxu0 0.0
    %119 = vmatprep.subr.mxu0 0.0
    %120 = vmatpush1.msra.mxu0 0.0
    %121 = vmatprep.subr.mxu0 0.0
    %122 = vmatpush1.msra.mxu0 0.0
    %123 = vmatprep.subr.mxu0 0.0
    %124 = vmatpush1.msra.mxu0 0.0
    %125 = vmatprep.subr.mxu0 0.0
    %126 = vmatpush1.msra.mxu0 0.0
    %127 = vmatprep.subr.mxu0 0.0
    %128 = vmatpush1.msra.mxu0 0.0
    %129 = vmatprep.subr.mxu0 0.0
    %130 = vmatpush1.msra.mxu0 0.0
    %131 = vmatprep.subr.mxu0 0.0
    %132 = vmatpush1.msra.mxu0 0.0
    %133 = vmatprep.subr.mxu0 0.0
    %134 = vmatpush1.msra.mxu0 0.0
    %135 = vmatprep.subr.mxu0 0.0
    %136 = vmatpush1.msra.mxu0 0.0
    %137 = vmatprep.subr.mxu0 0.0
    %138 = vmatpush1.msra.mxu0 0.0
    %139 = vmatprep.subr.mxu0 0.0
    %140 = vmatpush1.msra.mxu0 0.0
    %141 = vmatprep.mubr.f32.mxu0 0.0
    %142 = vmatmul.mubr.f32.gmra.mrb[0].mxu0 %v75
    %v143 = vpop.f32.mrb[0].mxu0
    %v144 = vadd.f32 0.0, %v143
    %v145 = vpop.f32.mrb[0].mxu0
    %146 = vdwg.mxu0
    %vm147 = vcmask 780288
    %v148 = vsel %vm147, %v144, 0.0
    %v149 = vrot.slane %v148, 4
    %v150 = vadd.f32 %v148, %v149
    %v151 = vrot.slane %v150, 2
    %v152 = vadd.f32 %v150, %v151
    %v153 = vrot.slane %v152, 1
    %v154 = vadd.f32 %v152, %v153
    %v155 = vadd.f32 %v66, %v154
    %v156 = vxor.u32 %v155, 2147483648
    %v157 = vmul.f32 %v156, 1.442695
    %v158 = vpow.pop %v157
    %v159 = vadd.f32 %v158, 1.0
    %v160 = vrcp.pop %v159
    %v161 = vmul.f32 1.0, %v160
    %v162 = vtanh.pop %v155
    %v163 = vlaneseq
    %v164 = vshrl.u32 %v163, 7
    %v165 = vsub.s32 0, %v164
    %v166 = vrot.slane %v66, %v165
    %v167 = vadd.f32 %v144, %v166
    %v168 = vxor.u32 %v167, 2147483648
    %v169 = vmul.f32 %v168, 1.442695
    %v170 = vpow.pop %v169
    %v171 = vadd.f32 %v170, 1.0
    %v172 = vrcp.pop %v171
    %v173 = vmul.f32 1.0, %v172
    %175 = vrot.lane.b32.xlu0 %v162, 64
    %v176 = vpop.permute.xlu0 %175
    %v178 = vmul.f32 %v161, %v176
    %v180 = vmul.f32 %v173, %v73
    %vm181 = vcmask 1043200
    %v182 = vsel %vm181, %v180, 0.0
    %v183 = vrot.slane %v182, 4
    %v184 = vadd.f32 %v182, %v183
    %v185 = vrot.slane %v184, 2
    %v186 = vadd.f32 %v184, %v185
    %v187 = vrot.slane %v186, 1
    %v188 = vadd.f32 %v186, %v187
    %190 = vrot.lane.b32.xlu0 %v188, 32
    %v191 = vpop.permute.xlu0 %190
    %v193 = vadd.f32 %v178, %v191
    %v194 = vtanh.pop %v193
    %196 = vrot.lane.b32.xlu0 %v194, 32
    %v197 = vpop.permute.xlu0 %196
    %v199 = vmul.f32 %v161, %v197
    %v200 = vsel %vm74, %v193, %v199
    %vm201 = vcmask 523264
    %v202 = vsel %vm201, %v200, 0.0
    %203 = vst [vmem:[#allocation7] sm:$0x1] %v202
    %s204 = sld [smem:[#allocation5 + $0x3]]
    %s205 = scalar_lea.vmem [#allocation7], %s204
    %v206 = vld [vmem:[%s205] sm:$0x1]
    %s207 = sld [smem:[#allocation5 + $0x4]]
    %s208 = scalar_lea.vmem [#allocation7], %s207
    %v209 = vld [vmem:[%s208] sm:$0x1]
    %s210 = sld [smem:[#allocation5 + $0x5]]
    %s211 = scalar_lea.vmem [#allocation7], %s210
    %v212 = vld [vmem:[%s211] sm:$0x1]
    %v214 = vrot.slane %v209, 7
    %v217 = vrot.slane %v212, 6
    %v219 = vsel %vm60, %v206, %v214
    %v220 = vsel %vm62, %v219, %v217
    %s221 = sld [smem:[#allocation2 + $0x1]]
    %s222 = scalar_lea.vmem %s2, %s221
    %v223 = vld [vmem:[%s222] sm:$0x1]
    %v224 = vld [vmem:[%s3] sm:$0xff]
    %v225 = vld [vmem:[%s3 + $0x8] sm:$0xff]
    %v226 = vld [vmem:[%s3 + $0x10] sm:$0xff]
    %v227 = vld [vmem:[%s3 + $0x18] sm:$0xff]
    %229 = vrot.lane.b32.xlu0 %v220, 96
    %v230 = vpop.permute.xlu0 %229
    %v231 = vsel %vm74, %v230, 0
    %233 = vmatprep.subr.mxu0 0.0
    %234 = vmatpush1.msra.mxu0 %v224
    %235 = vmatprep.subr.mxu0 0.0
    %236 = vmatpush1.msra.mxu0 %v225
    %237 = vmatprep.subr.mxu0 0.0
    %238 = vmatpush1.msra.mxu0 %v226
    %239 = vmatprep.subr.mxu0 0.0
    %240 = vmatpush1.msra.mxu0 %v227
    %241 = vmatprep.subr.mxu0 0.0
    %242 = vmatpush1.msra.mxu0 0.0
    %243 = vmatprep.subr.mxu0 0.0
    %244 = vmatpush1.msra.mxu0 0.0
    %245 = vmatprep.subr.mxu0 0.0
    %246 = vmatpush1.msra.mxu0 0.0
    %247 = vmatprep.subr.mxu0 0.0
    %248 = vmatpush1.msra.mxu0 0.0
    %249 = vmatprep.subr.mxu0 0.0
    %250 = vmatpush1.msra.mxu0 0.0
    %251 = vmatprep.subr.mxu0 0.0
    %252 = vmatpush1.msra.mxu0 0.0
    %253 = vmatprep.subr.mxu0 0.0
    %254 = vmatpush1.msra.mxu0 0.0
    %255 = vmatprep.subr.mxu0 0.0
    %256 = vmatpush1.msra.mxu0 0.0
    %257 = vmatprep.subr.mxu0 0.0
    %258 = vmatpush1.msra.mxu0 0.0
    %259 = vmatprep.subr.mxu0 0.0
    %260 = vmatpush1.msra.mxu0 0.0
    %261 = vmatprep.subr.mxu0 0.0
    %262 = vmatpush1.msra.mxu0 0.0
    %263 = vmatprep.subr.mxu0 0.0
    %264 = vmatpush1.msra.mxu0 0.0
    %265 = vmatprep.subr.mxu0 0.0
    %266 = vmatpush1.msra.mxu0 0.0
    %267 = vmatprep.subr.mxu0 0.0
    %268 = vmatpush1.msra.mxu0 0.0
    %269 = vmatprep.subr.mxu0 0.0
    %270 = vmatpush1.msra.mxu0 0.0
    %271 = vmatprep.subr.mxu0 0.0
    %272 = vmatpush1.msra.mxu0 0.0
    %273 = vmatprep.subr.mxu0 0.0
    %274 = vmatpush1.msra.mxu0 0.0
    %275 = vmatprep.subr.mxu0 0.0
    %276 = vmatpush1.msra.mxu0 0.0
    %277 = vmatprep.subr.mxu0 0.0
    %278 = vmatpush1.msra.mxu0 0.0
    %279 = vmatprep.subr.mxu0 0.0
    %280 = vmatpush1.msra.mxu0 0.0
    %281 = vmatprep.subr.mxu0 0.0
    %282 = vmatpush1.msra.mxu0 0.0
    %283 = vmatprep.subr.mxu0 0.0
    %284 = vmatpush1.msra.mxu0 0.0
    %285 = vmatprep.subr.mxu0 0.0
    %286 = vmatpush1.msra.mxu0 0.0
    %287 = vmatprep.subr.mxu0 0.0
    %288 = vmatpush1.msra.mxu0 0.0
    %289 = vmatprep.subr.mxu0 0.0
    %290 = vmatpush1.msra.mxu0 0.0
    %291 = vmatprep.subr.mxu0 0.0
    %292 = vmatpush1.msra.mxu0 0.0
    %293 = vmatprep.subr.mxu0 0.0
    %294 = vmatpush1.msra.mxu0 0.0
    %295 = vmatprep.subr.mxu0 0.0
    %296 = vmatpush1.msra.mxu0 0.0
    %297 = vmatprep.mubr.f32.mxu0 0.0
    %298 = vmatmul.mubr.f32.gmra.mrb[0].mxu0 %v231
    %v299 = vpop.f32.mrb[0].mxu0
    %v300 = vadd.f32 0.0, %v299
    %v301 = vpop.f32.mrb[0].mxu0
    %302 = vdwg.mxu0
    %v303 = vsel %vm147, %v300, 0.0
    %v304 = vrot.slane %v303, 4
    %v305 = vadd.f32 %v303, %v304
    %v306 = vrot.slane %v305, 2
    %v307 = vadd.f32 %v305, %v306
    %v308 = vrot.slane %v307, 1
    %v309 = vadd.f32 %v307, %v308
    %v310 = vadd.f32 %v223, %v309
    %v311 = vxor.u32 %v310, 2147483648
    %v312 = vmul.f32 %v311, 1.442695
    %v313 = vpow.pop %v312
    %v314 = vadd.f32 %v313, 1.0
    %v315 = vrcp.pop %v314
    %v316 = vmul.f32 1.0, %v315
    %v317 = vtanh.pop %v310
    %v318 = vlaneseq
    %v319 = vshrl.u32 %v318, 7
    %v320 = vsub.s32 0, %v319
    %v321 = vrot.slane %v223, %v320
    %v322 = vadd.f32 %v300, %v321
    %v323 = vxor.u32 %v322, 2147483648
    %v324 = vmul.f32 %v323, 1.442695
    %v325 = vpow.pop %v324
    %v326 = vadd.f32 %v325, 1.0
    %v327 = vrcp.pop %v326
    %v328 = vmul.f32 1.0, %v327
    %330 = vrot.lane.b32.xlu0 %v317, 64
    %v331 = vpop.permute.xlu0 %330
    %v333 = vmul.f32 %v316, %v331
    %v335 = vmul.f32 %v328, %v230
    %v336 = vsel %vm181, %v335, 0.0
    %v337 = vrot.slane %v336, 4
    %v338 = vadd.f32 %v336, %v337
    %v339 = vrot.slane %v338, 2
    %v340 = vadd.f32 %v338, %v339
    %v341 = vrot.slane %v340, 1
    %v342 = vadd.f32 %v340, %v341
    %344 = vrot.lane.b32.xlu0 %v342, 32
    %v345 = vpop.permute.xlu0 %344
    %v347 = vadd.f32 %v333, %v345
    %v348 = vtanh.pop %v347
    %350 = vrot.lane.b32.xlu0 %v348, 32
    %v351 = vpop.permute.xlu0 %350
    %v353 = vmul.f32 %v316, %v351
    %v354 = vsel %vm74, %v347, %v353
    %v355 = vsel %vm201, %v354, 0.0
    %356 = vst [vmem:[#allocation7 + $0x1] sm:$0x1] %v355
    %s357 = sld [smem:[#allocation5 + $0x6]]
    %s358 = scalar_lea.vmem [#allocation7], %s357
    %v359 = vld [vmem:[%s358] sm:$0x1]
    %s360 = sld [smem:[#allocation5 + $0x7]]
    %s361 = scalar_lea.vmem [#allocation7], %s360
    %v362 = vld [vmem:[%s361] sm:$0x1]
    %s363 = sld [smem:[#allocation5 + $0x8]]
    %s364 = scalar_lea.vmem [#allocation7], %s363
    %v365 = vld [vmem:[%s364] sm:$0x1]
    %v367 = vrot.slane %v362, 7
    %v370 = vrot.slane %v365, 6
    %v372 = vsel %vm60, %v359, %v367
    %v373 = vsel %vm62, %v372, %v370
    %s374 = sld [smem:[#allocation2 + $0x2]]
    %s375 = scalar_lea.vmem %s2, %s374
    %v376 = vld [vmem:[%s375] sm:$0x1]
    %v377 = vld [vmem:[%s3] sm:$0xff]
    %v378 = vld [vmem:[%s3 + $0x8] sm:$0xff]
    %v379 = vld [vmem:[%s3 + $0x10] sm:$0xff]
    %v380 = vld [vmem:[%s3 + $0x18] sm:$0xff]
    %382 = vrot.lane.b32.xlu0 %v373, 96
    %v383 = vpop.permute.xlu0 %382
    %v384 = vsel %vm74, %v383, 0
    %386 = vmatprep.subr.mxu0 0.0
    %387 = vmatpush1.msra.mxu0 %v377
    %388 = vmatprep.subr.mxu0 0.0
    %389 = vmatpush1.msra.mxu0 %v378
    %390 = vmatprep.subr.mxu0 0.0
    %391 = vmatpush1.msra.mxu0 %v379
    %392 = vmatprep.subr.mxu0 0.0
    %393 = vmatpush1.msra.mxu0 %v380
    %394 = vmatprep.subr.mxu0 0.0
    %395 = vmatpush1.msra.mxu0 0.0
    %396 = vmatprep.subr.mxu0 0.0
    %397 = vmatpush1.msra.mxu0 0.0
    %398 = vmatprep.subr.mxu0 0.0
    %399 = vmatpush1.msra.mxu0 0.0
    %400 = vmatprep.subr.mxu0 0.0
    %401 = vmatpush1.msra.mxu0 0.0
    %402 = vmatprep.subr.mxu0 0.0
    %403 = vmatpush1.msra.mxu0 0.0
    %404 = vmatprep.subr.mxu0 0.0
    %405 = vmatpush1.msra.mxu0 0.0
    %406 = vmatprep.subr.mxu0 0.0
    %407 = vmatpush1.msra.mxu0 0.0
    %408 = vmatprep.subr.mxu0 0.0
    %409 = vmatpush1.msra.mxu0 0.0
    %410 = vmatprep.subr.mxu0 0.0
    %411 = vmatpush1.msra.mxu0 0.0
    %412 = vmatprep.subr.mxu0 0.0
    %413 = vmatpush1.msra.mxu0 0.0
    %414 = vmatprep.subr.mxu0 0.0
    %415 = vmatpush1.msra.mxu0 0.0
    %416 = vmatprep.subr.mxu0 0.0
    %417 = vmatpush1.msra.mxu0 0.0
    %418 = vmatprep.subr.mxu0 0.0
    %419 = vmatpush1.msra.mxu0 0.0
    %420 = vmatprep.subr.mxu0 0.0
    %421 = vmatpush1.msra.mxu0 0.0
    %422 = vmatprep.subr.mxu0 0.0
    %423 = vmatpush1.msra.mxu0 0.0
    %424 = vmatprep.subr.mxu0 0.0
    %425 = vmatpush1.msra.mxu0 0.0
    %426 = vmatprep.subr.mxu0 0.0
    %427 = vmatpush1.msra.mxu0 0.0
    %428 = vmatprep.subr.mxu0 0.0
    %429 = vmatpush1.msra.mxu0 0.0
    %430 = vmatprep.subr.mxu0 0.0
    %431 = vmatpush1.msra.mxu0 0.0
    %432 = vmatprep.subr.mxu0 0.0
    %433 = vmatpush1.msra.mxu0 0.0
    %434 = vmatprep.subr.mxu0 0.0
    %435 = vmatpush1.msra.mxu0 0.0
    %436 = vmatprep.subr.mxu0 0.0
    %437 = vmatpush1.msra.mxu0 0.0
    %438 = vmatprep.subr.mxu0 0.0
    %439 = vmatpush1.msra.mxu0 0.0
    %440 = vmatprep.subr.mxu0 0.0
    %441 = vmatpush1.msra.mxu0 0.0
    %442 = vmatprep.subr.mxu0 0.0
    %443 = vmatpush1.msra.mxu0 0.0
    %444 = vmatprep.subr.mxu0 0.0
    %445 = vmatpush1.msra.mxu0 0.0
    %446 = vmatprep.subr.mxu0 0.0
    %447 = vmatpush1.msra.mxu0 0.0
    %448 = vmatprep.subr.mxu0 0.0
    %449 = vmatpush1.msra.mxu0 0.0
    %450 = vmatprep.mubr.f32.mxu0 0.0
    %451 = vmatmul.mubr.f32.gmra.mrb[0].mxu0 %v384
    %v452 = vpop.f32.mrb[0].mxu0
    %v453 = vadd.f32 0.0, %v452
    %v454 = vpop.f32.mrb[0].mxu0
    %455 = vdwg.mxu0
    %v456 = vsel %vm147, %v453, 0.0
    %v457 = vrot.slane %v456, 4
    %v458 = vadd.f32 %v456, %v457
    %v459 = vrot.slane %v458, 2
    %v460 = vadd.f32 %v458, %v459
    %v461 = vrot.slane %v460, 1
    %v462 = vadd.f32 %v460, %v461
    %v463 = vadd.f32 %v376, %v462
    %v464 = vxor.u32 %v463, 2147483648
    %v465 = vmul.f32 %v464, 1.442695
    %v466 = vpow.pop %v465
    %v467 = vadd.f32 %v466, 1.0
    %v468 = vrcp.pop %v467
    %v469 = vmul.f32 1.0, %v468
    %v470 = vtanh.pop %v463
    %v471 = vlaneseq
    %v472 = vshrl.u32 %v471, 7
    %v473 = vsub.s32 0, %v472
    %v474 = vrot.slane %v376, %v473
    %v475 = vadd.f32 %v453, %v474
    %v476 = vxor.u32 %v475, 2147483648
    %v477 = vmul.f32 %v476, 1.442695
    %v478 = vpow.pop %v477
    %v479 = vadd.f32 %v478, 1.0
    %v480 = vrcp.pop %v479
    %v481 = vmul.f32 1.0, %v480
    %483 = vrot.lane.b32.xlu0 %v470, 64
    %v484 = vpop.permute.xlu0 %483
    %v486 = vmul.f32 %v469, %v484
    %v488 = vmul.f32 %v481, %v383
    %v489 = vsel %vm181, %v488, 0.0
    %v490 = vrot.slane %v489, 4
    %v491 = vadd.f32 %v489, %v490
    %v492 = vrot.slane %v491, 2
    %v493 = vadd.f32 %v491, %v492
    %v494 = vrot.slane %v493, 1
    %v495 = vadd.f32 %v493, %v494
    %497 = vrot.lane.b32.xlu0 %v495, 32
    %v498 = vpop.permute.xlu0 %497
    %v500 = vadd.f32 %v486, %v498
    %v501 = vtanh.pop %v500
    %503 = vrot.lane.b32.xlu0 %v501, 32
    %v504 = vpop.permute.xlu0 %503
    %v506 = vmul.f32 %v469, %v504
    %v507 = vsel %vm74, %v500, %v506
    %v508 = vsel %vm201, %v507, 0.0
    %509 = vst [vmem:[#allocation7 + $0x2] sm:$0x1] %v508
    %s510 = sld [smem:[#allocation5 + $0x9]]
    %s511 = scalar_lea.vmem [#allocation7], %s510
    %v512 = vld [vmem:[%s511] sm:$0x1]
    %s513 = sld [smem:[#allocation5 + $0xa]]
    %s514 = scalar_lea.vmem [#allocation7], %s513
    %v515 = vld [vmem:[%s514] sm:$0x1]
    %s516 = sld [smem:[#allocation5 + $0xb]]
    %s517 = scalar_lea.vmem [#allocation7], %s516
    %v518 = vld [vmem:[%s517] sm:$0x1]
    %v520 = vrot.slane %v515, 7
    %v523 = vrot.slane %v518, 6
    %v525 = vsel %vm60, %v512, %v520
    %v526 = vsel %vm62, %v525, %v523
    %s527 = sld [smem:[#allocation2 + $0x3]]
    %s528 = scalar_lea.vmem %s2, %s527
    %v529 = vld [vmem:[%s528] sm:$0x1]
    %v530 = vld [vmem:[%s3] sm:$0xff]
    %v531 = vld [vmem:[%s3 + $0x8] sm:$0xff]
    %v532 = vld [vmem:[%s3 + $0x10] sm:$0xff]
    %v533 = vld [vmem:[%s3 + $0x18] sm:$0xff]
    %535 = vrot.lane.b32.xlu0 %v526, 96
    %v536 = vpop.permute.xlu0 %535
    %v537 = vsel %vm74, %v536, 0
    %539 = vmatprep.subr.mxu0 0.0
    %540 = vmatpush1.msra.mxu0 %v530
    %541 = vmatprep.subr.mxu0 0.0
    %542 = vmatpush1.msra.mxu0 %v531
    %543 = vmatprep.subr.mxu0 0.0
    %544 = vmatpush1.msra.mxu0 %v532
    %545 = vmatprep.subr.mxu0 0.0
    %546 = vmatpush1.msra.mxu0 %v533
    %547 = vmatprep.subr.mxu0 0.0
    %548 = vmatpush1.msra.mxu0 0.0
    %549 = vmatprep.subr.mxu0 0.0
    %550 = vmatpush1.msra.mxu0 0.0
    %551 = vmatprep.subr.mxu0 0.0
    %552 = vmatpush1.msra.mxu0 0.0
    %553 = vmatprep.subr.mxu0 0.0
    %554 = vmatpush1.msra.mxu0 0.0
    %555 = vmatprep.subr.mxu0 0.0
    %556 = vmatpush1.msra.mxu0 0.0
    %557 = vmatprep.subr.mxu0 0.0
    %558 = vmatpush1.msra.mxu0 0.0
    %559 = vmatprep.subr.mxu0 0.0
    %560 = vmatpush1.msra.mxu0 0.0
    %561 = vmatprep.subr.mxu0 0.0
    %562 = vmatpush1.msra.mxu0 0.0
    %563 = vmatprep.subr.mxu0 0.0
    %564 = vmatpush1.msra.mxu0 0.0
    %565 = vmatprep.subr.mxu0 0.0
    %566 = vmatpush1.msra.mxu0 0.0
    %567 = vmatprep.subr.mxu0 0.0
    %568 = vmatpush1.msra.mxu0 0.0
    %569 = vmatprep.subr.mxu0 0.0
    %570 = vmatpush1.msra.mxu0 0.0
    %571 = vmatprep.subr.mxu0 0.0
    %572 = vmatpush1.msra.mxu0 0.0
    %573 = vmatprep.subr.mxu0 0.0
    %574 = vmatpush1.msra.mxu0 0.0
    %575 = vmatprep.subr.mxu0 0.0
    %576 = vmatpush1.msra.mxu0 0.0
    %577 = vmatprep.subr.mxu0 0.0
    %578 = vmatpush1.msra.mxu0 0.0
    %579 = vmatprep.subr.mxu0 0.0
    %580 = vmatpush1.msra.mxu0 0.0
    %581 = vmatprep.subr.mxu0 0.0
    %582 = vmatpush1.msra.mxu0 0.0
    %583 = vmatprep.subr.mxu0 0.0
    %584 = vmatpush1.msra.mxu0 0.0
    %585 = vmatprep.subr.mxu0 0.0
    %586 = vmatpush1.msra.mxu0 0.0
    %587 = vmatprep.subr.mxu0 0.0
    %588 = vmatpush1.msra.mxu0 0.0
    %589 = vmatprep.subr.mxu0 0.0
    %590 = vmatpush1.msra.mxu0 0.0
    %591 = vmatprep.subr.mxu0 0.0
    %592 = vmatpush1.msra.mxu0 0.0
    %593 = vmatprep.subr.mxu0 0.0
    %594 = vmatpush1.msra.mxu0 0.0
    %595 = vmatprep.subr.mxu0 0.0
    %596 = vmatpush1.msra.mxu0 0.0
    %597 = vmatprep.subr.mxu0 0.0
    %598 = vmatpush1.msra.mxu0 0.0
    %599 = vmatprep.subr.mxu0 0.0
    %600 = vmatpush1.msra.mxu0 0.0
    %601 = vmatprep.subr.mxu0 0.0
    %602 = vmatpush1.msra.mxu0 0.0
    %603 = vmatprep.mubr.f32.mxu0 0.0
    %604 = vmatmul.mubr.f32.gmra.mrb[0].mxu0 %v537
    %v605 = vpop.f32.mrb[0].mxu0
    %v606 = vadd.f32 0.0, %v605
    %v607 = vpop.f32.mrb[0].mxu0
    %608 = vdwg.mxu0
    %v609 = vsel %vm147, %v606, 0.0
    %v610 = vrot.slane %v609, 4
    %v611 = vadd.f32 %v609, %v610
    %v612 = vrot.slane %v611, 2
    %v613 = vadd.f32 %v611, %v612
    %v614 = vrot.slane %v613, 1
    %v615 = vadd.f32 %v613, %v614
    %v616 = vadd.f32 %v529, %v615
    %v617 = vxor.u32 %v616, 2147483648
    %v618 = vmul.f32 %v617, 1.442695
    %v619 = vpow.pop %v618
    %v620 = vadd.f32 %v619, 1.0
    %v621 = vrcp.pop %v620
    %v622 = vmul.f32 1.0, %v621
    %v623 = vtanh.pop %v616
    %v624 = vlaneseq
    %v625 = vshrl.u32 %v624, 7
    %v626 = vsub.s32 0, %v625
    %v627 = vrot.slane %v529, %v626
    %v628 = vadd.f32 %v606, %v627
    %v629 = vxor.u32 %v628, 2147483648
    %v630 = vmul.f32 %v629, 1.442695
    %v631 = vpow.pop %v630
    %v632 = vadd.f32 %v631, 1.0
    %v633 = vrcp.pop %v632
    %v634 = vmul.f32 1.0, %v633
    %636 = vrot.lane.b32.xlu0 %v623, 64
    %v637 = vpop.permute.xlu0 %636
    %v639 = vmul.f32 %v622, %v637
    %v641 = vmul.f32 %v634, %v536
    %v642 = vsel %vm181, %v641, 0.0
    %v643 = vrot.slane %v642, 4
    %v644 = vadd.f32 %v642, %v643
    %v645 = vrot.slane %v644, 2
    %v646 = vadd.f32 %v644, %v645
    %v647 = vrot.slane %v646, 1
    %v648 = vadd.f32 %v646, %v647
    %650 = vrot.lane.b32.xlu0 %v648, 32
    %v651 = vpop.permute.xlu0 %650
    %v653 = vadd.f32 %v639, %v651
    %v654 = vtanh.pop %v653
    %656 = vrot.lane.b32.xlu0 %v654, 32
    %v657 = vpop.permute.xlu0 %656
    %v659 = vmul.f32 %v622, %v657
    %v660 = vsel %vm74, %v653, %v659
    %v661 = vsel %vm201, %v660, 0.0
    %662 = vst [vmem:[#allocation7 + $0x3] sm:$0x1] %v661
    %s663 = sld [smem:[#allocation5 + $0xc]]
    %s664 = scalar_lea.vmem [#allocation7], %s663
    %v665 = vld [vmem:[%s664] sm:$0x1]
    %s666 = sld [smem:[#allocation5 + $0xd]]
    %s667 = scalar_lea.vmem [#allocation7], %s666
    %v668 = vld [vmem:[%s667] sm:$0x1]
    %s669 = sld [smem:[#allocation5 + $0xe]]
    %s670 = scalar_lea.vmem [#allocation7], %s669
    %v671 = vld [vmem:[%s670] sm:$0x1]
    %v673 = vrot.slane %v668, 7
    %v676 = vrot.slane %v671, 6
    %v678 = vsel %vm60, %v665, %v673
    %v679 = vsel %vm62, %v678, %v676
    %s680 = sld [smem:[#allocation2 + $0x4]]
    %s681 = scalar_lea.vmem %s2, %s680
    %v682 = vld [vmem:[%s681] sm:$0x1]
    %v683 = vld [vmem:[%s3] sm:$0xff]
    %v684 = vld [vmem:[%s3 + $0x8] sm:$0xff]
    %v685 = vld [vmem:[%s3 + $0x10] sm:$0xff]
    %v686 = vld [vmem:[%s3 + $0x18] sm:$0xff]
    %688 = vrot.lane.b32.xlu0 %v679, 96
    %v689 = vpop.permute.xlu0 %688
    %v690 = vsel %vm74, %v689, 0
    %692 = vmatprep.subr.mxu0 0.0
    %693 = vmatpush1.msra.mxu0 %v683
    %694 = vmatprep.subr.mxu0 0.0
    %695 = vmatpush1.msra.mxu0 %v684
    %696 = vmatprep.subr.mxu0 0.0
    %697 = vmatpush1.msra.mxu0 %v685
    %698 = vmatprep.subr.mxu0 0.0
    %699 = vmatpush1.msra.mxu0 %v686
    %700 = vmatprep.subr.mxu0 0.0
    %701 = vmatpush1.msra.mxu0 0.0
    %702 = vmatprep.subr.mxu0 0.0
    %703 = vmatpush1.msra.mxu0 0.0
    %704 = vmatprep.subr.mxu0 0.0
    %705 = vmatpush1.msra.mxu0 0.0
    %706 = vmatprep.subr.mxu0 0.0
    %707 = vmatpush1.msra.mxu0 0.0
    %708 = vmatprep.subr.mxu0 0.0
    %709 = vmatpush1.msra.mxu0 0.0
    %710 = vmatprep.subr.mxu0 0.0
    %711 = vmatpush1.msra.mxu0 0.0
    %712 = vmatprep.subr.mxu0 0.0
    %713 = vmatpush1.msra.mxu0 0.0
    %714 = vmatprep.subr.mxu0 0.0
    %715 = vmatpush1.msra.mxu0 0.0
    %716 = vmatprep.subr.mxu0 0.0
    %717 = vmatpush1.msra.mxu0 0.0
    %718 = vmatprep.subr.mxu0 0.0
    %719 = vmatpush1.msra.mxu0 0.0
    %720 = vmatprep.subr.mxu0 0.0
    %721 = vmatpush1.msra.mxu0 0.0
    %722 = vmatprep.subr.mxu0 0.0
    %723 = vmatpush1.msra.mxu0 0.0
    %724 = vmatprep.subr.mxu0 0.0
    %725 = vmatpush1.msra.mxu0 0.0
    %726 = vmatprep.subr.mxu0 0.0
    %727 = vmatpush1.msra.mxu0 0.0
    %728 = vmatprep.subr.mxu0 0.0
    %729 = vmatpush1.msra.mxu0 0.0
    %730 = vmatprep.subr.mxu0 0.0
    %731 = vmatpush1.msra.mxu0 0.0
    %732 = vmatprep.subr.mxu0 0.0
    %733 = vmatpush1.msra.mxu0 0.0
    %734 = vmatprep.subr.mxu0 0.0
    %735 = vmatpush1.msra.mxu0 0.0
    %736 = vmatprep.subr.mxu0 0.0
    %737 = vmatpush1.msra.mxu0 0.0
    %738 = vmatprep.subr.mxu0 0.0
    %739 = vmatpush1.msra.mxu0 0.0
    %740 = vmatprep.subr.mxu0 0.0
    %741 = vmatpush1.msra.mxu0 0.0
    %742 = vmatprep.subr.mxu0 0.0
    %743 = vmatpush1.msra.mxu0 0.0
    %744 = vmatprep.subr.mxu0 0.0
    %745 = vmatpush1.msra.mxu0 0.0
    %746 = vmatprep.subr.mxu0 0.0
    %747 = vmatpush1.msra.mxu0 0.0
    %748 = vmatprep.subr.mxu0 0.0
    %749 = vmatpush1.msra.mxu0 0.0
    %750 = vmatprep.subr.mxu0 0.0
    %751 = vmatpush1.msra.mxu0 0.0
    %752 = vmatprep.subr.mxu0 0.0
    %753 = vmatpush1.msra.mxu0 0.0
    %754 = vmatprep.subr.mxu0 0.0
    %755 = vmatpush1.msra.mxu0 0.0
    %756 = vmatprep.mubr.f32.mxu0 0.0
    %757 = vmatmul.mubr.f32.gmra.mrb[0].mxu0 %v690
    %v758 = vpop.f32.mrb[0].mxu0
    %v759 = vadd.f32 0.0, %v758
    %v760 = vpop.f32.mrb[0].mxu0
    %761 = vdwg.mxu0
    %v762 = vsel %vm147, %v759, 0.0
    %v763 = vrot.slane %v762, 4
    %v764 = vadd.f32 %v762, %v763
    %v765 = vrot.slane %v764, 2
    %v766 = vadd.f32 %v764, %v765
    %v767 = vrot.slane %v766, 1
    %v768 = vadd.f32 %v766, %v767
    %v769 = vadd.f32 %v682, %v768
    %v770 = vxor.u32 %v769, 2147483648
    %v771 = vmul.f32 %v770, 1.442695
    %v772 = vpow.pop %v771
    %v773 = vadd.f32 %v772, 1.0
    %v774 = vrcp.pop %v773
    %v775 = vmul.f32 1.0, %v774
    %v776 = vtanh.pop %v769
    %v777 = vlaneseq
    %v778 = vshrl.u32 %v777, 7
    %v779 = vsub.s32 0, %v778
    %v780 = vrot.slane %v682, %v779
    %v781 = vadd.f32 %v759, %v780
    %v782 = vxor.u32 %v781, 2147483648
    %v783 = vmul.f32 %v782, 1.442695
    %v784 = vpow.pop %v783
    %v785 = vadd.f32 %v784, 1.0
    %v786 = vrcp.pop %v785
    %v787 = vmul.f32 1.0, %v786
    %789 = vrot.lane.b32.xlu0 %v776, 64
    %v790 = vpop.permute.xlu0 %789
    %v792 = vmul.f32 %v775, %v790
    %v794 = vmul.f32 %v787, %v689
    %v795 = vsel %vm181, %v794, 0.0
    %v796 = vrot.slane %v795, 4
    %v797 = vadd.f32 %v795, %v796
    %v798 = vrot.slane %v797, 2
    %v799 = vadd.f32 %v797, %v798
    %v800 = vrot.slane %v799, 1
    %v801 = vadd.f32 %v799, %v800
    %803 = vrot.lane.b32.xlu0 %v801, 32
    %v804 = vpop.permute.xlu0 %803
    %v806 = vadd.f32 %v792, %v804
    %v807 = vtanh.pop %v806
    %809 = vrot.lane.b32.xlu0 %v807, 32
    %v810 = vpop.permute.xlu0 %809
    %v812 = vmul.f32 %v775, %v810
    %v813 = vsel %vm74, %v806, %v812
    %v814 = vsel %vm201, %v813, 0.0
    %815 = vst [vmem:[#allocation7 + $0x4] sm:$0x1] %v814
    %s816 = sld [smem:[#allocation5 + $0xf]]
    %s817 = scalar_lea.vmem [#allocation7], %s816
    %v818 = vld [vmem:[%s817] sm:$0x1]
    %s819 = sld [smem:[#allocation5 + $0x10]]
    %s820 = scalar_lea.vmem [#allocation7], %s819
    %v821 = vld [vmem:[%s820] sm:$0x1]
    %s822 = sld [smem:[#allocation5 + $0x11]]
    %s823 = scalar_lea.vmem [#allocation7], %s822
    %v824 = vld [vmem:[%s823] sm:$0x1]
    %v826 = vrot.slane %v821, 7
    %v829 = vrot.slane %v824, 6
    %v831 = vsel %vm60, %v818, %v826
    %v832 = vsel %vm62, %v831, %v829
    %s833 = sld [smem:[#allocation2 + $0x5]]
    %s834 = scalar_lea.vmem %s2, %s833
    %v835 = vld [vmem:[%s834] sm:$0x1]
    %v836 = vld [vmem:[%s3] sm:$0xff]
    %v837 = vld [vmem:[%s3 + $0x8] sm:$0xff]
    %v838 = vld [vmem:[%s3 + $0x10] sm:$0xff]
    %v839 = vld [vmem:[%s3 + $0x18] sm:$0xff]
    %841 = vrot.lane.b32.xlu0 %v832, 96
    %v842 = vpop.permute.xlu0 %841
    %v843 = vsel %vm74, %v842, 0
    %845 = vmatprep.subr.mxu0 0.0
    %846 = vmatpush1.msra.mxu0 %v836
    %847 = vmatprep.subr.mxu0 0.0
    %848 = vmatpush1.msra.mxu0 %v837
    %849 = vmatprep.subr.mxu0 0.0
    %850 = vmatpush1.msra.mxu0 %v838
    %851 = vmatprep.subr.mxu0 0.0
    %852 = vmatpush1.msra.mxu0 %v839
    %853 = vmatprep.subr.mxu0 0.0
    %854 = vmatpush1.msra.mxu0 0.0
    %855 = vmatprep.subr.mxu0 0.0
    %856 = vmatpush1.msra.mxu0 0.0
    %857 = vmatprep.subr.mxu0 0.0
    %858 = vmatpush1.msra.mxu0 0.0
    %859 = vmatprep.subr.mxu0 0.0
    %860 = vmatpush1.msra.mxu0 0.0
    %861 = vmatprep.subr.mxu0 0.0
    %862 = vmatpush1.msra.mxu0 0.0
    %863 = vmatprep.subr.mxu0 0.0
    %864 = vmatpush1.msra.mxu0 0.0
    %865 = vmatprep.subr.mxu0 0.0
    %866 = vmatpush1.msra.mxu0 0.0
    %867 = vmatprep.subr.mxu0 0.0
    %868 = vmatpush1.msra.mxu0 0.0
    %869 = vmatprep.subr.mxu0 0.0
    %870 = vmatpush1.msra.mxu0 0.0
    %871 = vmatprep.subr.mxu0 0.0
    %872 = vmatpush1.msra.mxu0 0.0
    %873 = vmatprep.subr.mxu0 0.0
    %874 = vmatpush1.msra.mxu0 0.0
    %875 = vmatprep.subr.mxu0 0.0
    %876 = vmatpush1.msra.mxu0 0.0
    %877 = vmatprep.subr.mxu0 0.0
    %878 = vmatpush1.msra.mxu0 0.0
    %879 = vmatprep.subr.mxu0 0.0
    %880 = vmatpush1.msra.mxu0 0.0
    %881 = vmatprep.subr.mxu0 0.0
    %882 = vmatpush1.msra.mxu0 0.0
    %883 = vmatprep.subr.mxu0 0.0
    %884 = vmatpush1.msra.mxu0 0.0
    %885 = vmatprep.subr.mxu0 0.0
    %886 = vmatpush1.msra.mxu0 0.0
    %887 = vmatprep.subr.mxu0 0.0
    %888 = vmatpush1.msra.mxu0 0.0
    %889 = vmatprep.subr.mxu0 0.0
    %890 = vmatpush1.msra.mxu0 0.0
    %891 = vmatprep.subr.mxu0 0.0
    %892 = vmatpush1.msra.mxu0 0.0
    %893 = vmatprep.subr.mxu0 0.0
    %894 = vmatpush1.msra.mxu0 0.0
    %895 = vmatprep.subr.mxu0 0.0
    %896 = vmatpush1.msra.mxu0 0.0
    %897 = vmatprep.subr.mxu0 0.0
    %898 = vmatpush1.msra.mxu0 0.0
    %899 = vmatprep.subr.mxu0 0.0
    %900 = vmatpush1.msra.mxu0 0.0
    %901 = vmatprep.subr.mxu0 0.0
    %902 = vmatpush1.msra.mxu0 0.0
    %903 = vmatprep.subr.mxu0 0.0
    %904 = vmatpush1.msra.mxu0 0.0
    %905 = vmatprep.subr.mxu0 0.0
    %906 = vmatpush1.msra.mxu0 0.0
    %907 = vmatprep.subr.mxu0 0.0
    %908 = vmatpush1.msra.mxu0 0.0
    %909 = vmatprep.mubr.f32.mxu0 0.0
    %910 = vmatmul.mubr.f32.gmra.mrb[0].mxu0 %v843
    %v911 = vpop.f32.mrb[0].mxu0
    %v912 = vadd.f32 0.0, %v911
    %v913 = vpop.f32.mrb[0].mxu0
    %914 = vdwg.mxu0
    %v915 = vsel %vm147, %v912, 0.0
    %v916 = vrot.slane %v915, 4
    %v917 = vadd.f32 %v915, %v916
    %v918 = vrot.slane %v917, 2
    %v919 = vadd.f32 %v917, %v918
    %v920 = vrot.slane %v919, 1
    %v921 = vadd.f32 %v919, %v920
    %v922 = vadd.f32 %v835, %v921
    %v923 = vxor.u32 %v922, 2147483648
    %v924 = vmul.f32 %v923, 1.442695
    %v925 = vpow.pop %v924
    %v926 = vadd.f32 %v925, 1.0
    %v927 = vrcp.pop %v926
    %v928 = vmul.f32 1.0, %v927
    %v929 = vtanh.pop %v922
    %v930 = vlaneseq
    %v931 = vshrl.u32 %v930, 7
    %v932 = vsub.s32 0, %v931
    %v933 = vrot.slane %v835, %v932
    %v934 = vadd.f32 %v912, %v933
    %v935 = vxor.u32 %v934, 2147483648
    %v936 = vmul.f32 %v935, 1.442695
    %v937 = vpow.pop %v936
    %v938 = vadd.f32 %v937, 1.0
    %v939 = vrcp.pop %v938
    %v940 = vmul.f32 1.0, %v939
    %942 = vrot.lane.b32.xlu0 %v929, 64
    %v943 = vpop.permute.xlu0 %942
    %v945 = vmul.f32 %v928, %v943
    %v947 = vmul.f32 %v940, %v842
    %v948 = vsel %vm181, %v947, 0.0
    %v949 = vrot.slane %v948, 4
    %v950 = vadd.f32 %v948, %v949
    %v951 = vrot.slane %v950, 2
    %v952 = vadd.f32 %v950, %v951
    %v953 = vrot.slane %v952, 1
    %v954 = vadd.f32 %v952, %v953
    %956 = vrot.lane.b32.xlu0 %v954, 32
    %v957 = vpop.permute.xlu0 %956
    %v959 = vadd.f32 %v945, %v957
    %v960 = vtanh.pop %v959
    %962 = vrot.lane.b32.xlu0 %v960, 32
    %v963 = vpop.permute.xlu0 %962
    %v965 = vmul.f32 %v928, %v963
    %v966 = vsel %vm74, %v959, %v965
    %v967 = vsel %vm201, %v966, 0.0
    %968 = vst [vmem:[#allocation7 + $0x5] sm:$0x1] %v967
    %s969 = sld [smem:[#allocation5 + $0x12]]
    %s970 = scalar_lea.vmem [#allocation7], %s969
    %v971 = vld [vmem:[%s970] sm:$0x1]
    %s972 = sld [smem:[#allocation5 + $0x13]]
    %s973 = scalar_lea.vmem [#allocation7], %s972
    %v974 = vld [vmem:[%s973] sm:$0x1]
    %s975 = sld [smem:[#allocation5 + $0x14]]
    %s976 = scalar_lea.vmem [#allocation7], %s975
    %v977 = vld [vmem:[%s976] sm:$0x1]
    %v979 = vrot.slane %v974, 7
    %v982 = vrot.slane %v977, 6
    %v984 = vsel %vm60, %v971, %v979
    %v985 = vsel %vm62, %v984, %v982
    %s986 = sld [smem:[#allocation2 + $0x6]]
    %s987 = scalar_lea.vmem %s2, %s986
    %v988 = vld [vmem:[%s987] sm:$0x1]
    %v989 = vld [vmem:[%s3] sm:$0xff]
    %v990 = vld [vmem:[%s3 + $0x8] sm:$0xff]
    %v991 = vld [vmem:[%s3 + $0x10] sm:$0xff]
    %v992 = vld [vmem:[%s3 + $0x18] sm:$0xff]
    %994 = vrot.lane.b32.xlu0 %v985, 96
    %v995 = vpop.permute.xlu0 %994
    %v996 = vsel %vm74, %v995, 0
    %998 = vmatprep.subr.mxu0 0.0
    %999 = vmatpush1.msra.mxu0 %v989
    %1000 = vmatprep.subr.mxu0 0.0
    %1001 = vmatpush1.msra.mxu0 %v990
    %1002 = vmatprep.subr.mxu0 0.0
    %1003 = vmatpush1.msra.mxu0 %v991
    %1004 = vmatprep.subr.mxu0 0.0
    %1005 = vmatpush1.msra.mxu0 %v992
    %1006 = vmatprep.subr.mxu0 0.0
    %1007 = vmatpush1.msra.mxu0 0.0
    %1008 = vmatprep.subr.mxu0 0.0
    %1009 = vmatpush1.msra.mxu0 0.0
    %1010 = vmatprep.subr.mxu0 0.0
    %1011 = vmatpush1.msra.mxu0 0.0
    %1012 = vmatprep.subr.mxu0 0.0
    %1013 = vmatpush1.msra.mxu0 0.0
    %1014 = vmatprep.subr.mxu0 0.0
    %1015 = vmatpush1.msra.mxu0 0.0
    %1016 = vmatprep.subr.mxu0 0.0
    %1017 = vmatpush1.msra.mxu0 0.0
    %1018 = vmatprep.subr.mxu0 0.0
    %1019 = vmatpush1.msra.mxu0 0.0
    %1020 = vmatprep.subr.mxu0 0.0
    %1021 = vmatpush1.msra.mxu0 0.0
    %1022 = vmatprep.subr.mxu0 0.0
    %1023 = vmatpush1.msra.mxu0 0.0
    %1024 = vmatprep.subr.mxu0 0.0
    %1025 = vmatpush1.msra.mxu0 0.0
    %1026 = vmatprep.subr.mxu0 0.0
    %1027 = vmatpush1.msra.mxu0 0.0
    %1028 = vmatprep.subr.mxu0 0.0
    %1029 = vmatpush1.msra.mxu0 0.0
    %1030 = vmatprep.subr.mxu0 0.0
    %1031 = vmatpush1.msra.mxu0 0.0
    %1032 = vmatprep.subr.mxu0 0.0
    %1033 = vmatpush1.msra.mxu0 0.0
    %1034 = vmatprep.subr.mxu0 0.0
    %1035 = vmatpush1.msra.mxu0 0.0
    %1036 = vmatprep.subr.mxu0 0.0
    %1037 = vmatpush1.msra.mxu0 0.0
    %1038 = vmatprep.subr.mxu0 0.0
    %1039 = vmatpush1.msra.mxu0 0.0
    %1040 = vmatprep.subr.mxu0 0.0
    %1041 = vmatpush1.msra.mxu0 0.0
    %1042 = vmatprep.subr.mxu0 0.0
    %1043 = vmatpush1.msra.mxu0 0.0
    %1044 = vmatprep.subr.mxu0 0.0
    %1045 = vmatpush1.msra.mxu0 0.0
    %1046 = vmatprep.subr.mxu0 0.0
    %1047 = vmatpush1.msra.mxu0 0.0
    %1048 = vmatprep.subr.mxu0 0.0
    %1049 = vmatpush1.msra.mxu0 0.0
    %1050 = vmatprep.subr.mxu0 0.0
    %1051 = vmatpush1.msra.mxu0 0.0
    %1052 = vmatprep.subr.mxu0 0.0
    %1053 = vmatpush1.msra.mxu0 0.0
    %1054 = vmatprep.subr.mxu0 0.0
    %1055 = vmatpush1.msra.mxu0 0.0
    %1056 = vmatprep.subr.mxu0 0.0
    %1057 = vmatpush1.msra.mxu0 0.0
    %1058 = vmatprep.subr.mxu0 0.0
    %1059 = vmatpush1.msra.mxu0 0.0
    %1060 = vmatprep.subr.mxu0 0.0
    %1061 = vmatpush1.msra.mxu0 0.0
    %1062 = vmatprep.mubr.f32.mxu0 0.0
    %1063 = vmatmul.mubr.f32.gmra.mrb[0].mxu0 %v996
    %v1064 = vpop.f32.mrb[0].mxu0
    %v1065 = vadd.f32 0.0, %v1064
    %v1066 = vpop.f32.mrb[0].mxu0
    %1067 = vdwg.mxu0
    %v1068 = vsel %vm147, %v1065, 0.0
    %v1069 = vrot.slane %v1068, 4
    %v1070 = vadd.f32 %v1068, %v1069
    %v1071 = vrot.slane %v1070, 2
    %v1072 = vadd.f32 %v1070, %v1071
    %v1073 = vrot.slane %v1072, 1
    %v1074 = vadd.f32 %v1072, %v1073
    %v1075 = vadd.f32 %v988, %v1074
    %v1076 = vxor.u32 %v1075, 2147483648
    %v1077 = vmul.f32 %v1076, 1.442695
    %v1078 = vpow.pop %v1077
    %v1079 = vadd.f32 %v1078, 1.0
    %v1080 = vrcp.pop %v1079
    %v1081 = vmul.f32 1.0, %v1080
    %v1082 = vtanh.pop %v1075
    %v1083 = vlaneseq
    %v1084 = vshrl.u32 %v1083, 7
    %v1085 = vsub.s32 0, %v1084
    %v1086 = vrot.slane %v988, %v1085
    %v1087 = vadd.f32 %v1065, %v1086
    %v1088 = vxor.u32 %v1087, 2147483648
    %v1089 = vmul.f32 %v1088, 1.442695
    %v1090 = vpow.pop %v1089
    %v1091 = vadd.f32 %v1090, 1.0
    %v1092 = vrcp.pop %v1091
    %v1093 = vmul.f32 1.0, %v1092
    %1095 = vrot.lane.b32.xlu0 %v1082, 64
    %v1096 = vpop.permute.xlu0 %1095
    %v1098 = vmul.f32 %v1081, %v1096
    %v1100 = vmul.f32 %v1093, %v995
    %v1101 = vsel %vm181, %v1100, 0.0
    %v1102 = vrot.slane %v1101, 4
    %v1103 = vadd.f32 %v1101, %v1102
    %v1104 = vrot.slane %v1103, 2
    %v1105 = vadd.f32 %v1103, %v1104
    %v1106 = vrot.slane %v1105, 1
    %v1107 = vadd.f32 %v1105, %v1106
    %1109 = vrot.lane.b32.xlu0 %v1107, 32
    %v1110 = vpop.permute.xlu0 %1109
    %v1112 = vadd.f32 %v1098, %v1110
    %v1113 = vtanh.pop %v1112
    %1115 = vrot.lane.b32.xlu0 %v1113, 32
    %v1116 = vpop.permute.xlu0 %1115
    %v1118 = vmul.f32 %v1081, %v1116
    %v1119 = vsel %vm74, %v1112, %v1118
    %v1120 = vsel %vm201, %v1119, 0.0
    %1121 = vst [vmem:[#allocation7 + $0x6] sm:$0x1] %v1120
    %s1122 = sld [smem:[#allocation5 + $0x15]]
    %s1123 = scalar_lea.vmem [#allocation7], %s1122
    %v1124 = vld [vmem:[%s1123] sm:$0x1]
    %s1125 = sld [smem:[#allocation5 + $0x16]]
    %s1126 = scalar_lea.vmem [#allocation7], %s1125
    %v1127 = vld [vmem:[%s1126] sm:$0x1]
    %s1128 = sld [smem:[#allocation5 + $0x17]]
    %s1129 = scalar_lea.vmem [#allocation7], %s1128
    %v1130 = vld [vmem:[%s1129] sm:$0x1]
    %v1132 = vrot.slane %v1127, 7
    %v1135 = vrot.slane %v1130, 6
    %v1137 = vsel %vm60, %v1124, %v1132
    %v1138 = vsel %vm62, %v1137, %v1135
    %s1139 = sld [smem:[#allocation2 + $0x7]]
    %s1140 = scalar_lea.vmem %s2, %s1139
    %v1141 = vld [vmem:[%s1140] sm:$0x1]
    %v1142 = vld [vmem:[%s3] sm:$0xff]
    %v1143 = vld [vmem:[%s3 + $0x8] sm:$0xff]
    %v1144 = vld [vmem:[%s3 + $0x10] sm:$0xff]
    %v1145 = vld [vmem:[%s3 + $0x18] sm:$0xff]
    %1147 = vrot.lane.b32.xlu0 %v1138, 96
    %v1148 = vpop.permute.xlu0 %1147
    %v1149 = vsel %vm74, %v1148, 0
    %1151 = vmatprep.subr.mxu0 0.0
    %1152 = vmatpush1.msra.mxu0 %v1142
    %1153 = vmatprep.subr.mxu0 0.0
    %1154 = vmatpush1.msra.mxu0 %v1143
    %1155 = vmatprep.subr.mxu0 0.0
    %1156 = vmatpush1.msra.mxu0 %v1144
    %1157 = vmatprep.subr.mxu0 0.0
    %1158 = vmatpush1.msra.mxu0 %v1145
    %1159 = vmatprep.subr.mxu0 0.0
    %1160 = vmatpush1.msra.mxu0 0.0
    %1161 = vmatprep.subr.mxu0 0.0
    %1162 = vmatpush1.msra.mxu0 0.0
    %1163 = vmatprep.subr.mxu0 0.0
    %1164 = vmatpush1.msra.mxu0 0.0
    %1165 = vmatprep.subr.mxu0 0.0
    %1166 = vmatpush1.msra.mxu0 0.0
    %1167 = vmatprep.subr.mxu0 0.0
    %1168 = vmatpush1.msra.mxu0 0.0
    %1169 = vmatprep.subr.mxu0 0.0
    %1170 = vmatpush1.msra.mxu0 0.0
    %1171 = vmatprep.subr.mxu0 0.0
    %1172 = vmatpush1.msra.mxu0 0.0
    %1173 = vmatprep.subr.mxu0 0.0
    %1174 = vmatpush1.msra.mxu0 0.0
    %1175 = vmatprep.subr.mxu0 0.0
    %1176 = vmatpush1.msra.mxu0 0.0
    %1177 = vmatprep.subr.mxu0 0.0
    %1178 = vmatpush1.msra.mxu0 0.0
    %1179 = vmatprep.subr.mxu0 0.0
    %1180 = vmatpush1.msra.mxu0 0.0
    %1181 = vmatprep.subr.mxu0 0.0
    %1182 = vmatpush1.msra.mxu0 0.0
    %1183 = vmatprep.subr.mxu0 0.0
    %1184 = vmatpush1.msra.mxu0 0.0
    %1185 = vmatprep.subr.mxu0 0.0
    %1186 = vmatpush1.msra.mxu0 0.0
    %1187 = vmatprep.subr.mxu0 0.0
    %1188 = vmatpush1.msra.mxu0 0.0
    %1189 = vmatprep.subr.mxu0 0.0
    %1190 = vmatpush1.msra.mxu0 0.0
    %1191 = vmatprep.subr.mxu0 0.0
    %1192 = vmatpush1.msra.mxu0 0.0
    %1193 = vmatprep.subr.mxu0 0.0
    %1194 = vmatpush1.msra.mxu0 0.0
    %1195 = vmatprep.subr.mxu0 0.0
    %1196 = vmatpush1.msra.mxu0 0.0
    %1197 = vmatprep.subr.mxu0 0.0
    %1198 = vmatpush1.msra.mxu0 0.0
    %1199 = vmatprep.subr.mxu0 0.0
    %1200 = vmatpush1.msra.mxu0 0.0
    %1201 = vmatprep.subr.mxu0 0.0
    %1202 = vmatpush1.msra.mxu0 0.0
    %1203 = vmatprep.subr.mxu0 0.0
    %1204 = vmatpush1.msra.mxu0 0.0
    %1205 = vmatprep.subr.mxu0 0.0
    %1206 = vmatpush1.msra.mxu0 0.0
    %1207 = vmatprep.subr.mxu0 0.0
    %1208 = vmatpush1.msra.mxu0 0.0
    %1209 = vmatprep.subr.mxu0 0.0
    %1210 = vmatpush1.msra.mxu0 0.0
    %1211 = vmatprep.subr.mxu0 0.0
    %1212 = vmatpush1.msra.mxu0 0.0
    %1213 = vmatprep.subr.mxu0 0.0
    %1214 = vmatpush1.msra.mxu0 0.0
    %1215 = vmatprep.mubr.f32.mxu0 0.0
    %1216 = vmatmul.mubr.f32.gmra.mrb[0].mxu0 %v1149
    %v1217 = vpop.f32.mrb[0].mxu0
    %v1218 = vadd.f32 0.0, %v1217
    %v1219 = vpop.f32.mrb[0].mxu0
    %1220 = vdwg.mxu0
    %v1221 = vsel %vm147, %v1218, 0.0
    %v1222 = vrot.slane %v1221, 4
    %v1223 = vadd.f32 %v1221, %v1222
    %v1224 = vrot.slane %v1223, 2
    %v1225 = vadd.f32 %v1223, %v1224
    %v1226 = vrot.slane %v1225, 1
    %v1227 = vadd.f32 %v1225, %v1226
    %v1228 = vadd.f32 %v1141, %v1227
    %v1229 = vxor.u32 %v1228, 2147483648
    %v1230 = vmul.f32 %v1229, 1.442695
    %v1231 = vpow.pop %v1230
    %v1232 = vadd.f32 %v1231, 1.0
    %v1233 = vrcp.pop %v1232
    %v1234 = vmul.f32 1.0, %v1233
    %v1235 = vtanh.pop %v1228
    %v1236 = vlaneseq
    %v1237 = vshrl.u32 %v1236, 7
    %v1238 = vsub.s32 0, %v1237
    %v1239 = vrot.slane %v1141, %v1238
    %v1240 = vadd.f32 %v1218, %v1239
    %v1241 = vxor.u32 %v1240, 2147483648
    %v1242 = vmul.f32 %v1241, 1.442695
    %v1243 = vpow.pop %v1242
    %v1244 = vadd.f32 %v1243, 1.0
    %v1245 = vrcp.pop %v1244
    %v1246 = vmul.f32 1.0, %v1245
    %1248 = vrot.lane.b32.xlu0 %v1235, 64
    %v1249 = vpop.permute.xlu0 %1248
    %v1251 = vmul.f32 %v1234, %v1249
    %v1253 = vmul.f32 %v1246, %v1148
    %v1254 = vsel %vm181, %v1253, 0.0
    %v1255 = vrot.slane %v1254, 4
    %v1256 = vadd.f32 %v1254, %v1255
    %v1257 = vrot.slane %v1256, 2
    %v1258 = vadd.f32 %v1256, %v1257
    %v1259 = vrot.slane %v1258, 1
    %v1260 = vadd.f32 %v1258, %v1259
    %1262 = vrot.lane.b32.xlu0 %v1260, 32
    %v1263 = vpop.permute.xlu0 %1262
    %v1265 = vadd.f32 %v1251, %v1263
    %v1266 = vtanh.pop %v1265
    %1268 = vrot.lane.b32.xlu0 %v1266, 32
    %v1269 = vpop.permute.xlu0 %1268
    %v1271 = vmul.f32 %v1234, %v1269
    %v1272 = vsel %vm74, %v1265, %v1271
    %v1273 = vsel %vm201, %v1272, 0.0
    %1274 = vst [vmem:[#allocation7 + $0x7] sm:$0x1] %v1273
    %s1275 = sld [smem:[#allocation5 + $0x18]]
    %s1276 = scalar_lea.vmem [#allocation7], %s1275
    %v1277 = vld [vmem:[%s1276] sm:$0x1]
    %s1278 = sld [smem:[#allocation5 + $0x19]]
    %s1279 = scalar_lea.vmem [#allocation7], %s1278
    %v1280 = vld [vmem:[%s1279] sm:$0x1]
    %s1281 = sld [smem:[#allocation5 + $0x1a]]
    %s1282 = scalar_lea.vmem [#allocation7], %s1281
    %v1283 = vld [vmem:[%s1282] sm:$0x1]
    %v1285 = vrot.slane %v1280, 7
    %v1288 = vrot.slane %v1283, 6
    %v1290 = vsel %vm60, %v1277, %v1285
    %v1291 = vsel %vm62, %v1290, %v1288
    %s1292 = sld [smem:[#allocation2 + $0x8]]
    %s1293 = scalar_lea.vmem %s2, %s1292
    %v1294 = vld [vmem:[%s1293] sm:$0x1]
    %v1295 = vld [vmem:[%s3] sm:$0xff]
    %v1296 = vld [vmem:[%s3 + $0x8] sm:$0xff]
    %v1297 = vld [vmem:[%s3 + $0x10] sm:$0xff]
    %v1298 = vld [vmem:[%s3 + $0x18] sm:$0xff]
    %1300 = vrot.lane.b32.xlu0 %v1291, 96
    %v1301 = vpop.permute.xlu0 %1300
    %v1302 = vsel %vm74, %v1301, 0
    %1304 = vmatprep.subr.mxu0 0.0
    %1305 = vmatpush1.msra.mxu0 %v1295
    %1306 = vmatprep.subr.mxu0 0.0
    %1307 = vmatpush1.msra.mxu0 %v1296
    %1308 = vmatprep.subr.mxu0 0.0
    %1309 = vmatpush1.msra.mxu0 %v1297
    %1310 = vmatprep.subr.mxu0 0.0
    %1311 = vmatpush1.msra.mxu0 %v1298
    %1312 = vmatprep.subr.mxu0 0.0
    %1313 = vmatpush1.msra.mxu0 0.0
    %1314 = vmatprep.subr.mxu0 0.0
    %1315 = vmatpush1.msra.mxu0 0.0
    %1316 = vmatprep.subr.mxu0 0.0
    %1317 = vmatpush1.msra.mxu0 0.0
    %1318 = vmatprep.subr.mxu0 0.0
    %1319 = vmatpush1.msra.mxu0 0.0
    %1320 = vmatprep.subr.mxu0 0.0
    %1321 = vmatpush1.msra.mxu0 0.0
    %1322 = vmatprep.subr.mxu0 0.0
    %1323 = vmatpush1.msra.mxu0 0.0
    %1324 = vmatprep.subr.mxu0 0.0
    %1325 = vmatpush1.msra.mxu0 0.0
    %1326 = vmatprep.subr.mxu0 0.0
    %1327 = vmatpush1.msra.mxu0 0.0
    %1328 = vmatprep.subr.mxu0 0.0
    %1329 = vmatpush1.msra.mxu0 0.0
    %1330 = vmatprep.subr.mxu0 0.0
    %1331 = vmatpush1.msra.mxu0 0.0
    %1332 = vmatprep.subr.mxu0 0.0
    %1333 = vmatpush1.msra.mxu0 0.0
    %1334 = vmatprep.subr.mxu0 0.0
    %1335 = vmatpush1.msra.mxu0 0.0
    %1336 = vmatprep.subr.mxu0 0.0
    %1337 = vmatpush1.msra.mxu0 0.0
    %1338 = vmatprep.subr.mxu0 0.0
    %1339 = vmatpush1.msra.mxu0 0.0
    %1340 = vmatprep.subr.mxu0 0.0
    %1341 = vmatpush1.msra.mxu0 0.0
    %1342 = vmatprep.subr.mxu0 0.0
    %1343 = vmatpush1.msra.mxu0 0.0
    %1344 = vmatprep.subr.mxu0 0.0
    %1345 = vmatpush1.msra.mxu0 0.0
    %1346 = vmatprep.subr.mxu0 0.0
    %1347 = vmatpush1.msra.mxu0 0.0
    %1348 = vmatprep.subr.mxu0 0.0
    %1349 = vmatpush1.msra.mxu0 0.0
    %1350 = vmatprep.subr.mxu0 0.0
    %1351 = vmatpush1.msra.mxu0 0.0
    %1352 = vmatprep.subr.mxu0 0.0
    %1353 = vmatpush1.msra.mxu0 0.0
    %1354 = vmatprep.subr.mxu0 0.0
    %1355 = vmatpush1.msra.mxu0 0.0
    %1356 = vmatprep.subr.mxu0 0.0
    %1357 = vmatpush1.msra.mxu0 0.0
    %1358 = vmatprep.subr.mxu0 0.0
    %1359 = vmatpush1.msra.mxu0 0.0
    %1360 = vmatprep.subr.mxu0 0.0
    %1361 = vmatpush1.msra.mxu0 0.0
    %1362 = vmatprep.subr.mxu0 0.0
    %1363 = vmatpush1.msra.mxu0 0.0
    %1364 = vmatprep.subr.mxu0 0.0
    %1365 = vmatpush1.msra.mxu0 0.0
    %1366 = vmatprep.subr.mxu0 0.0
    %1367 = vmatpush1.msra.mxu0 0.0
    %1368 = vmatprep.mubr.f32.mxu0 0.0
    %1369 = vmatmul.mubr.f32.gmra.mrb[0].mxu0 %v1302
    %v1370 = vpop.f32.mrb[0].mxu0
    %v1371 = vadd.f32 0.0, %v1370
    %v1372 = vpop.f32.mrb[0].mxu0
    %1373 = vdwg.mxu0
    %v1374 = vsel %vm147, %v1371, 0.0
    %v1375 = vrot.slane %v1374, 4
    %v1376 = vadd.f32 %v1374, %v1375
    %v1377 = vrot.slane %v1376, 2
    %v1378 = vadd.f32 %v1376, %v1377
    %v1379 = vrot.slane %v1378, 1
    %v1380 = vadd.f32 %v1378, %v1379
    %v1381 = vadd.f32 %v1294, %v1380
    %v1382 = vxor.u32 %v1381, 2147483648
    %v1383 = vmul.f32 %v1382, 1.442695
    %v1384 = vpow.pop %v1383
    %v1385 = vadd.f32 %v1384, 1.0
    %v1386 = vrcp.pop %v1385
    %v1387 = vmul.f32 1.0, %v1386
    %v1388 = vtanh.pop %v1381
    %v1389 = vlaneseq
    %v1390 = vshrl.u32 %v1389, 7
    %v1391 = vsub.s32 0, %v1390
    %v1392 = vrot.slane %v1294, %v1391
    %v1393 = vadd.f32 %v1371, %v1392
    %v1394 = vxor.u32 %v1393, 2147483648
    %v1395 = vmul.f32 %v1394, 1.442695
    %v1396 = vpow.pop %v1395
    %v1397 = vadd.f32 %v1396, 1.0
    %v1398 = vrcp.pop %v1397
    %v1399 = vmul.f32 1.0, %v1398
    %1401 = vrot.lane.b32.xlu0 %v1388, 64
    %v1402 = vpop.permute.xlu0 %1401
    %v1404 = vmul.f32 %v1387, %v1402
    %v1406 = vmul.f32 %v1399, %v1301
    %v1407 = vsel %vm181, %v1406, 0.0
    %v1408 = vrot.slane %v1407, 4
    %v1409 = vadd.f32 %v1407, %v1408
    %v1410 = vrot.slane %v1409, 2
    %v1411 = vadd.f32 %v1409, %v1410
    %v1412 = vrot.slane %v1411, 1
    %v1413 = vadd.f32 %v1411, %v1412
    %1415 = vrot.lane.b32.xlu0 %v1413, 32
    %v1416 = vpop.permute.xlu0 %1415
    %v1418 = vadd.f32 %v1404, %v1416
    %v1419 = vtanh.pop %v1418
    %1421 = vrot.lane.b32.xlu0 %v1419, 32
    %v1422 = vpop.permute.xlu0 %1421
    %v1424 = vmul.f32 %v1387, %v1422
    %v1425 = vsel %vm74, %v1418, %v1424
    %v1426 = vsel %vm201, %v1425, 0.0
    %1427 = vst [vmem:[#allocation7 + $0x8] sm:$0x1] %v1426
    // Predicated region
    $region26: #{run.1} parent=1 // pred_check
      _
    $region27: #{run.1} parent=1 // pred_check_branch
      %1429 = sbr.rel (0) target = $region29
    $region28: #{run.1} parent=1 // pred_region
      %s1431 = ssub.s32 256, 256
      %1432 = vsyncadd [#allocation3], %s1431
      %s1433 = sshll.u32 [#allocation7], 4
      %s1434 = int_to_ptr.vmem [resolvable:$true] %s1433
      %1439 = dma.vmem_to_hbm [thread:$0]  %s1434, 256, %s4, [#allocation3], 128, 128, 8
    $region29: #{run.1} parent=1 // pred_fallthru
      _
    // Predicated region
    $region30: #{run.1} parent=1 // pred_check
      _
    $region31: #{run.1} parent=1 // pred_check_branch
      %1441 = sbr.rel (0) target = $region33
    $region32: #{run.1} parent=1 // pred_region
      %1442 = dma.done [#allocation3], 256
    $region33: #{run.1} parent=1 // pred_fallthru
      _
    %1443 = vsyncpa [#allocation3], 1
    %1444 = vsyncpa [#allocation4], 1
    %1445 = vsyncpa [#allocation6], 1

</llo_original>
